<compile_context>
chip_gen: v7x
topology: tpu7x:2x2x1
jax: 0.10.0
libtpu: 0.0.40
codegen_flags: <defaults>
</compile_context>

<pallas_src>
import jax
import jax.numpy as jnp
from jax.experimental import pallas as pl
from jax.experimental.pallas import tpu as pltpu

DEF_INTENSITY = 0.5
DEF_COLOR = (1.0, 1.0, 1.0)
DEF_DIRECTION = (0.0, 1.0, 0.0)


def _dirlight_kernel(pat_ref, light_ref, normals_ref, out_ref):
    # pat_ref:    (3, L) f32  -- row 0: tiled light_direction  [dx,dy,dz,dx,dy,dz,...]
    #                            row 1: tiled intensity*color  [kx,ky,kz,kx,ky,kz,...]
    #                            row 2: channel-2 mask          [0, 0, 1, 0, 0, 1,...]
    # light_ref/normals_ref/out_ref: (TR, L) f32, channel-interleaved flat data
    #   (flat index p = 3*face + channel, L % 3 == 0 so channels align per lane column).
    dvec = pat_ref[0:1, :]
    kvec = pat_ref[1:2, :]
    m2 = pat_ref[2:3, :]

    nrm = normals_ref[...]
    lgt = light_ref[...]
    L = nrm.shape[1]

    # Per-element contribution n[p] * direction[channel(p)].
    contrib = nrm * dvec
    # s[p] = contrib[p] + contrib[p-1] + contrib[p-2]  (np.roll semantics)
    # -> at channel-2 lanes this is the full per-face dot product.
    s = contrib + pltpu.roll(contrib, 1, 1) + pltpu.roll(contrib, 2, 1)
    cos2 = jnp.maximum(s, 0.0) * m2  # relu'd cosine, nonzero only at channel-2 lanes
    # Broadcast each face's cosine from its channel-2 lane back onto all 3 lanes:
    # roll by L-1 / L-2  ==  roll by -1 / -2.
    cosine = cos2 + pltpu.roll(cos2, L - 1, 1) + pltpu.roll(cos2, L - 2, 1)

    out_ref[...] = lgt + kvec * cosine


def directional_lighting(light, normals, light_intensity=DEF_INTENSITY,
                         light_color=DEF_COLOR, light_direction=DEF_DIRECTION,
                         *, lane_tile=3072, row_tile=16):
    """light, normals: [B, N, 3] float32 -> [B, N, 3] float32."""
    B, N, C = light.shape
    assert C == 3 and normals.shape == light.shape
    assert lane_tile % 384 == 0, "lane_tile must be a multiple of 3 (faces) and 128 (lanes)"
    assert row_tile % 8 == 0, "row_tile must be a multiple of 8 (sublanes)"

    total = B * N * 3
    block_elems = row_tile * lane_tile
    n_blocks = -(-total // block_elems)
    total_pad = n_blocks * block_elems

    # Pure flatten (no transpose); pad with zeros if the face count doesn't fill a block.
    flat_light = jnp.reshape(light, (total,)).astype(jnp.float32)
    flat_normals = jnp.reshape(normals, (total,)).astype(jnp.float32)
    if total_pad != total:
        flat_light = jnp.pad(flat_light, (0, total_pad - total))
        flat_normals = jnp.pad(flat_normals, (0, total_pad - total))

    rows = total_pad // lane_tile
    light2d = flat_light.reshape(rows, lane_tile)
    normals2d = flat_normals.reshape(rows, lane_tile)

    # Lane-pattern constants (intensity folded into the color at trace time).
    reps = lane_tile // 3
    d = jnp.asarray(light_direction, jnp.float32)
    k = jnp.float32(light_intensity) * jnp.asarray(light_color, jnp.float32)
    m = jnp.asarray([0.0, 0.0, 1.0], jnp.float32)
    pattern = jnp.stack([jnp.tile(d, reps), jnp.tile(k, reps), jnp.tile(m, reps)], axis=0)

    out2d = pl.pallas_call(
        _dirlight_kernel,
        out_shape=jax.ShapeDtypeStruct((rows, lane_tile), jnp.float32),
        grid=(n_blocks,),
        in_specs=[
            pl.BlockSpec((3, lane_tile), lambda i: (0, 0)),          # pattern (fetched once)
            pl.BlockSpec((row_tile, lane_tile), lambda i: (i, 0)),   # light
            pl.BlockSpec((row_tile, lane_tile), lambda i: (i, 0)),   # normals
        ],
        out_specs=pl.BlockSpec((row_tile, lane_tile), lambda i: (i, 0)),
        compiler_params=pltpu.CompilerParams(dimension_semantics=("parallel",)),
    )(pattern, light2d, normals2d)

    out_flat = out2d.reshape(total_pad)
    if total_pad != total:
        out_flat = out_flat[:total]
    return out_flat.reshape(B, N, 3)


def _reference(light, normals, intensity, color, direction):
    d = jnp.asarray(direction, jnp.float32)
    c = jnp.asarray(color, jnp.float32)
    cosine = jnp.maximum(jnp.sum(normals * d[None, None, :], axis=2), 0.0)
    return light + intensity * (c[None, None, :] * cosine[:, :, None])


if __name__ == "__main__":
    key = jax.random.PRNGKey(0)
    k1, k2, k3, k4 = jax.random.split(key, 4)

    # Case 1: tile-aligned mesh (default tiles -> 2 parallel grid steps, both TCs busy on v7x).
    B, N = 2, 16384
    light = jax.random.uniform(k1, (B, N, 3), dtype=jnp.float32)
    normals = jax.random.normal(k2, (B, N, 3), dtype=jnp.float32)
    normals = normals / jnp.linalg.norm(normals, axis=-1, keepdims=True)

    out = jax.block_until_ready(
        directional_lighting(light, normals, DEF_INTENSITY, DEF_COLOR, DEF_DIRECTION))
    ref = _reference(light, normals, DEF_INTENSITY, DEF_COLOR, DEF_DIRECTION)
    assert out.shape == (B, N, 3) and out.dtype == jnp.float32
    assert jnp.allclose(out, ref, atol=1e-5, rtol=1e-5)

    # Case 2: small, ragged face count (exercises the zero-pad path) + non-default lighting.
    B2, N2 = 2, 123
    light2 = jax.random.uniform(k3, (B2, N2, 3), dtype=jnp.float32)
    normals2 = jax.random.normal(k4, (B2, N2, 3), dtype=jnp.float32)
    normals2 = normals2 / jnp.linalg.norm(normals2, axis=-1, keepdims=True)
    inten2, color2, dir2 = 0.75, (0.9, 0.6, 0.3), (0.3, 0.8, -0.5)

    out2 = jax.block_until_ready(directional_lighting(light2, normals2, inten2, color2, dir2))
    ref2 = _reference(light2, normals2, inten2, color2, dir2)
    assert out2.shape == (B2, N2, 3)
    assert jnp.allclose(out2, ref2, atol=1e-5, rtol=1e-5)

    print("KERNEL_OK")
</pallas_src>

<mosaic_0001>
module attributes {stable_mosaic.version = 11 : i64} {
  func.func @_dirlight_kernel(%arg0: i32, %arg1: memref<3x3072xf32, #tpu.memory_space<vmem>>, %arg2: memref<16x3072xf32, #tpu.memory_space<vmem>>, %arg3: memref<16x3072xf32, #tpu.memory_space<vmem>>, %arg4: memref<16x3072xf32, #tpu.memory_space<vmem>>) attributes {dimension_semantics = [#tpu.dimension_semantics<parallel>], iteration_bounds = array<i64: 2>, scalar_prefetch = 0 : i64, scratch_operands = 0 : i64, tpu.core_type = #tpu.core_type<tc>, window_params = [{pipeline_mode = #tpu.pipeline_mode<synchronous>, transform_indices = @transform_0, window_bounds = array<i64: 3, 3072>}, {transform_indices = @transform_1, window_bounds = array<i64: 16, 3072>}, {transform_indices = @transform_2, window_bounds = array<i64: 16, 3072>}, {transform_indices = @transform_3, window_bounds = array<i64: 16, 3072>}]} {
    %c0 = arith.constant 0 : index
    %c0_0 = arith.constant 0 : index
    %0 = vector.load %arg1[%c0, %c0_0] : memref<3x3072xf32, #tpu.memory_space<vmem>>, vector<1x3072xf32>
    %c1 = arith.constant 1 : index
    %c0_1 = arith.constant 0 : index
    %1 = vector.load %arg1[%c1, %c0_1] : memref<3x3072xf32, #tpu.memory_space<vmem>>, vector<1x3072xf32>
    %c2 = arith.constant 2 : index
    %c0_2 = arith.constant 0 : index
    %2 = vector.load %arg1[%c2, %c0_2] : memref<3x3072xf32, #tpu.memory_space<vmem>>, vector<1x3072xf32>
    %c0_3 = arith.constant 0 : index
    %c0_4 = arith.constant 0 : index
    %3 = vector.load %arg3[%c0_3, %c0_4] : memref<16x3072xf32, #tpu.memory_space<vmem>>, vector<16x3072xf32>
    %c0_5 = arith.constant 0 : index
    %c0_6 = arith.constant 0 : index
    %4 = vector.load %arg2[%c0_5, %c0_6] : memref<16x3072xf32, #tpu.memory_space<vmem>>, vector<16x3072xf32>
    %5 = vector.broadcast %0 : vector<1x3072xf32> to vector<16x3072xf32>
    %6 = arith.mulf %3, %5 : vector<16x3072xf32>
    %c1_i32 = arith.constant 1 : i32
    %7 = tpu.dynamic_rotate %6 by %c1_i32 dim 1 : vector<16x3072xf32>, i32 -> vector<16x3072xf32>
    %8 = arith.addf %6, %7 : vector<16x3072xf32>
    %c2_i32 = arith.constant 2 : i32
    %9 = tpu.dynamic_rotate %6 by %c2_i32 dim 1 : vector<16x3072xf32>, i32 -> vector<16x3072xf32>
    %10 = arith.addf %8, %9 : vector<16x3072xf32>
    %cst = arith.constant 0.000000e+00 : f32
    %11 = vector.broadcast %cst : f32 to vector<16x3072xf32>
    %12 = arith.maximumf %10, %11 : vector<16x3072xf32>
    %13 = vector.broadcast %2 : vector<1x3072xf32> to vector<16x3072xf32>
    %14 = arith.mulf %12, %13 : vector<16x3072xf32>
    %c3071_i32 = arith.constant 3071 : i32
    %15 = tpu.dynamic_rotate %14 by %c3071_i32 dim 1 : vector<16x3072xf32>, i32 -> vector<16x3072xf32>
    %16 = arith.addf %14, %15 : vector<16x3072xf32>
    %c3070_i32 = arith.constant 3070 : i32
    %17 = tpu.dynamic_rotate %14 by %c3070_i32 dim 1 : vector<16x3072xf32>, i32 -> vector<16x3072xf32>
    %18 = arith.addf %16, %17 : vector<16x3072xf32>
    %19 = vector.broadcast %1 : vector<1x3072xf32> to vector<16x3072xf32>
    %20 = arith.mulf %19, %18 : vector<16x3072xf32>
    %21 = arith.addf %4, %20 : vector<16x3072xf32>
    %c0_7 = arith.constant 0 : index
    %c0_8 = arith.constant 0 : index
    %22 = vector.load %arg4[%c0_7, %c0_8] : memref<16x3072xf32, #tpu.memory_space<vmem>>, vector<16x3072xf32>
    tpu.vector_store %arg4[%c0_7, %c0_8], %21 {strides = array<i32>} : memref<16x3072xf32, #tpu.memory_space<vmem>>, vector<16x3072xf32>,
    return
  }
  func.func @transform_0(%arg0: i32) -> (i32, i32) {
    %c0_i32 = arith.constant 0 : i32
    %c0_i32_0 = arith.constant 0 : i32
    %c0_i32_1 = arith.constant 0 : i32
    return %c0_i32, %c0_i32_0 : i32, i32
  }
  func.func @transform_1(%arg0: i32) -> (i32, i32) {
    %c0_i32 = arith.constant 0 : i32
    %c0_i32_0 = arith.constant 0 : i32
    return %arg0, %c0_i32 : i32, i32
  }
  func.func @transform_2(%arg0: i32) -> (i32, i32) {
    %c0_i32 = arith.constant 0 : i32
    %c0_i32_0 = arith.constant 0 : i32
    return %arg0, %c0_i32 : i32, i32
  }
  func.func @transform_3(%arg0: i32) -> (i32, i32) {
    %c0_i32 = arith.constant 0 : i32
    %c0_i32_0 = arith.constant 0 : i32
    return %arg0, %c0_i32 : i32, i32
  }
}

</mosaic_0001>

<llo_original>
// kernel: tpu_custom_call.1
$region0: #{tpu_custom_call.1}
  #allocation0 [shape = 'u32[]', space=smem, size = 0x4, offset = 0x4, fixed_abs, tag = 'smem constant byte address 0x4 - core index']
  #allocation1 [shape = 'u32[144,128]{1,0:T(1,128)}', space=vmem, size = 0x12000, scoped, tag = 'internal scratch']
  %s0 = inlined_call_operand.hbm [shape: f32[3,3072], index: 0, kind: input, shape index: {}]
  %s1 = inlined_call_operand.hbm [shape: f32[32,3072], index: 1, kind: input, shape index: {}]
  %s2 = inlined_call_operand.hbm [shape: f32[32,3072], index: 2, kind: input, shape index: {}]
  %s3 = inlined_call_operand.hbm [shape: f32[32,3072], index: 3, kind: output, shape index: {}]
  %s4 = sld [smem:[#allocation0]]
  $region57: #{tpu_custom_call.1} parent=0
    _
  %s6 = ssub.s32 1, %s4
  %s7 = scalar_select 0, %s6, %s4
  $region1: #{tpu_custom_call.1} parent=0
    #allocation2 [shape = 'u8[49152]{0}', space=vmem, size = 0xc000, scoped, tag = 'input window, operand 0, single buffered']
    #allocation3 [shape = 's32[2]{0}', space=sflag, size = 0x8, scoped, tag = 'scoped memory for tpu_custom_call.1']
    #allocation4 [shape = 's32[2]{0}', space=sflag, size = 0x8, scoped, tag = 'scoped memory for tpu_custom_call.1']
    #allocation5 [shape = 'u8[393216]{0}', space=vmem, size = 0x60000, scoped, tag = 'input window, operand 1']
    #allocation6 [shape = 's32[2]{0}', space=sflag, size = 0x8, scoped, tag = 'scoped memory for tpu_custom_call.1']
    #allocation7 [shape = 'u8[393216]{0}', space=vmem, size = 0x60000, scoped, tag = 'input window, operand 2']
    #allocation8 [shape = 'u8[393216]{0}', space=vmem, size = 0x60000, scoped, tag = 'output window, operand 0']
    %8 = vsyncpa [#allocation3], 0
    %9 = vsyncpa [#allocation6], 0
    %s10 = scalar_lea.sflag [#allocation6], 1
    %11 = vsyncpa %s10, 0
    %12 = vsyncpa [#allocation4], 0
    %s13 = scalar_lea.sflag [#allocation4], 1
    %14 = vsyncpa %s13, 0
    loop: start=0, step=1, limit=4
    $region2: #{tpu_custom_call.1} parent=1 // loop_pre_header
      _
    $region3: #{tpu_custom_call.1} parent=1 // loop_header
      %s16 = sphi 0, %s20
      %p17 = scmp.ge.s32.totalorder %s16, 4
      %s24 = sphi 0, %s24
      %s26 = sphi 0, %s24
      %s27 = sphi 0, %s26
      %s41 = sphi 0, %s27
      %s47 = sphi 0, %s49
      %s50 = sphi 0, %s47
      %s51 = sphi 0, %s50
      %s67 = sphi 0, %s51
      %s73 = sphi 0, %s75
      %s76 = sphi 0, %s73
      %s77 = sphi 0, %s76
      %s93 = sphi 0, %s77
      %s99 = sphi 0, %s101
      %s102 = sphi 0, %s99
      %s103 = sphi 0, %s102
      %s119 = sphi 0, %s103
    $region4: #{tpu_custom_call.1} parent=1 // loop_header_branch
      %19 = sbr.rel (%p17) target = $region8
    $region5: #{tpu_custom_call.1} parent=1 // loop_body
      %s21 = ssub.s32 %s16, 1
      %s22 = ssub.s32 %s16, 2
      %s23 = sadd.s32 %s16, 1
      %s25 = sadd.s32 %s24, 1
      %p28 = scmp.eq.s32.totalorder %s16, 1
      %p29 = scmp.ne.s32.totalorder %s24, %s26
      %p30 = scmp.eq.s32.totalorder %s16, 0
      %p31 = por %p29, %p30
      %p32 = scmp.ne.s32.totalorder %s24, %s26
      %p33 = scmp.eq.s32.totalorder %s21, 1
      %p34 = por %p32, %p33
      %p35 = scmp.ne.s32.totalorder %s26, %s27
      %p36 = scmp.eq.s32.totalorder %s21, 0
      %p37 = por %p35, %p36
      %p38 = scmp.ne.s32.totalorder %s26, %s27
      %p39 = scmp.eq.s32.totalorder %s22, 1
      %p40 = por %p38, %p39
      %p42 = scmp.ne.s32.totalorder %s27, %s41
      %p43 = scmp.eq.s32.totalorder %s22, 0
      %p44 = por %p42, %p43
      %s45 = ssub.s32 %s16, %s23
      %p46 = scmp.eq.s32.totalorder %s45, 0
      %s48 = sadd.s32 %s47, 1
      %s49 = scalar_select %p46, %s47, %s48
      %p52 = pneg %p46
      %p53 = scmp.eq.s32.totalorder %s16, 1
      %p54 = por %p52, %p53
      %p55 = scmp.ne.s32.totalorder %s47, %s50
      %p56 = scmp.eq.s32.totalorder %s16, 0
      %p57 = por %p55, %p56
      %p58 = scmp.ne.s32.totalorder %s47, %s50
      %p59 = scmp.eq.s32.totalorder %s21, 1
      %p60 = por %p58, %p59
      %p61 = scmp.ne.s32.totalorder %s50, %s51
      %p62 = scmp.eq.s32.totalorder %s21, 0
      %p63 = por %p61, %p62
      %p64 = scmp.ne.s32.totalorder %s50, %s51
      %p65 = scmp.eq.s32.totalorder %s22, 1
      %p66 = por %p64, %p65
      %p68 = scmp.ne.s32.totalorder %s51, %s67
      %p69 = scmp.eq.s32.totalorder %s22, 0
      %p70 = por %p68, %p69
      %s71 = ssub.s32 %s16, %s23
      %p72 = scmp.eq.s32.totalorder %s71, 0
      %s74 = sadd.s32 %s73, 1
      %s75 = scalar_select %p72, %s73, %s74
      %p78 = pneg %p72
      %p79 = scmp.eq.s32.totalorder %s16, 1
      %p80 = por %p78, %p79
      %p81 = scmp.ne.s32.totalorder %s73, %s76
      %p82 = scmp.eq.s32.totalorder %s16, 0
      %p83 = por %p81, %p82
      %p84 = scmp.ne.s32.totalorder %s73, %s76
      %p85 = scmp.eq.s32.totalorder %s21, 1
      %p86 = por %p84, %p85
      %p87 = scmp.ne.s32.totalorder %s76, %s77
      %p88 = scmp.eq.s32.totalorder %s21, 0
      %p89 = por %p87, %p88
      %p90 = scmp.ne.s32.totalorder %s76, %s77
      %p91 = scmp.eq.s32.totalorder %s22, 1
      %p92 = por %p90, %p91
      %p94 = scmp.ne.s32.totalorder %s77, %s93
      %p95 = scmp.eq.s32.totalorder %s22, 0
      %p96 = por %p94, %p95
      %s97 = ssub.s32 %s16, %s23
      %p98 = scmp.eq.s32.totalorder %s97, 0
      %s100 = sadd.s32 %s99, 1
      %s101 = scalar_select %p98, %s99, %s100
      %p104 = pneg %p98
      %p105 = scmp.eq.s32.totalorder %s16, 1
      %p106 = por %p104, %p105
      %p107 = scmp.ne.s32.totalorder %s99, %s102
      %p108 = scmp.eq.s32.totalorder %s16, 0
      %p109 = por %p107, %p108
      %p110 = scmp.ne.s32.totalorder %s99, %s102
      %p111 = scmp.eq.s32.totalorder %s21, 1
      %p112 = por %p110, %p111
      %p113 = scmp.ne.s32.totalorder %s102, %s103
      %p114 = scmp.eq.s32.totalorder %s21, 0
      %p115 = por %p113, %p114
      %p116 = scmp.ne.s32.totalorder %s102, %s103
      %p117 = scmp.eq.s32.totalorder %s22, 1
      %p118 = por %p116, %p117
      %p120 = scmp.ne.s32.totalorder %s103, %s119
      %p121 = scmp.eq.s32.totalorder %s22, 0
      %p122 = por %p120, %p121
      %p123 = scmp.le.s32.totalorder 1, %s16
      %p124 = scmp.lt.s32.totalorder %s16, 3
      %p125 = pnand %p123, %p124
      %p126 = pneg %p125
      // Predicated region
      $region9: #{tpu_custom_call.1} parent=5 // pred_check
        _
      $region10: #{tpu_custom_call.1} parent=5 // pred_check_branch
        %128 = sbr.rel (%p125) target = $region12
      $region11: #{tpu_custom_call.1} parent=5 // pred_region
        %s129 = ssub.s32 %s16, 1
        // Predicated region
        $region13: #{tpu_custom_call.1} parent=11 // pred_check
          %p130 = pneg %p37
        $region14: #{tpu_custom_call.1} parent=11 // pred_check_branch
          %132 = sbr.rel (%p130) target = $region16
        $region15: #{tpu_custom_call.1} parent=11 // pred_region
          %s134 = ssub.s32 1536, 1536
          %135 = vsyncadd [#allocation3], %s134
          %s137 = sshll.u32 [#allocation2], 4
          %s138 = int_to_ptr.vmem [resolvable:$true] %s137
          %140 = dma.hbm_to_vmem [thread:$0]  %s0, 1536, %s138, [#allocation3]
        $region16: #{tpu_custom_call.1} parent=11 // pred_fallthru
          _
      $region12: #{tpu_custom_call.1} parent=5 // pred_fallthru
        _
      %p141 = scmp.lt.s32.totalorder %s16, 2
      // Predicated region
      $region17: #{tpu_custom_call.1} parent=5 // pred_check
        %p142 = pneg %p141
      $region18: #{tpu_custom_call.1} parent=5 // pred_check_branch
        %144 = sbr.rel (%p142) target = $region20
      $region19: #{tpu_custom_call.1} parent=5 // pred_region
        // Predicated region
        $region21: #{tpu_custom_call.1} parent=19 // pred_check
          %p145 = pneg %p57
        $region22: #{tpu_custom_call.1} parent=19 // pred_check_branch
          %147 = sbr.rel (%p145) target = $region24
        $region23: #{tpu_custom_call.1} parent=19 // pred_region
          %s148 = sand.u32 %s16, 1
          %s149 = scalar_lea.sflag [#allocation6], %s148
          %s150 = sand.u32 %s47, 1
          %s151 = smul.addr %s150, 384
          %s152 = scalar_lea.vmem [#allocation5], %s151
          %s153 = smul.u32 2, %s16
          %s155 = ssub.s32 6144, 6144
          %156 = vsyncadd %s149, %s155
          %s157 = smul.addr %s153, 24
          %s158 = smul.addr %s157, 128
          %s159 = scalar_lea.hbm %s1, %s158
          %s160 = sshll.u32 %s152, 4
          %s161 = int_to_ptr.vmem [resolvable:$true] %s160
          %166 = dma.hbm_to_vmem [thread:$0]  %s159, 6144, %s161, %s149, 3072, 3072, 192
        $region24: #{tpu_custom_call.1} parent=19 // pred_fallthru
          _
        // Predicated region
        $region25: #{tpu_custom_call.1} parent=19 // pred_check
          %p167 = pneg %p83
        $region26: #{tpu_custom_call.1} parent=19 // pred_check_branch
          %169 = sbr.rel (%p167) target = $region28
        $region27: #{tpu_custom_call.1} parent=19 // pred_region
          %s170 = sand.u32 %s16, 1
          %s171 = scalar_lea.sflag [#allocation6], %s170
          %s172 = sand.u32 %s73, 1
          %s173 = smul.addr %s172, 384
          %s174 = scalar_lea.vmem [#allocation7], %s173
          %s175 = smul.u32 2, %s16
          %s177 = ssub.s32 6144, 6144
          %178 = vsyncadd %s171, %s177
          %s179 = smul.addr %s175, 24
          %s180 = smul.addr %s179, 128
          %s181 = scalar_lea.hbm %s2, %s180
          %s182 = sshll.u32 %s174, 4
          %s183 = int_to_ptr.vmem [resolvable:$true] %s182
          %188 = dma.hbm_to_vmem [thread:$0]  %s181, 6144, %s183, %s171, 3072, 3072, 192
        $region28: #{tpu_custom_call.1} parent=19 // pred_fallthru
          _
      $region20: #{tpu_custom_call.1} parent=5 // pred_fallthru
        _
      %p189 = scmp.le.s32.totalorder 1, %s16
      %p190 = scmp.lt.s32.totalorder %s16, 3
      %p191 = pnand %p189, %p190
      %p192 = pneg %p191
      // Predicated region
      $region29: #{tpu_custom_call.1} parent=5 // pred_check
        _
      $region30: #{tpu_custom_call.1} parent=5 // pred_check_branch
        %194 = sbr.rel (%p191) target = $region32
      $region31: #{tpu_custom_call.1} parent=5 // pred_region
        %s195 = ssub.s32 %s16, 1
        // Predicated region
        $region33: #{tpu_custom_call.1} parent=31 // pred_check
          %p196 = pneg %p37
        $region34: #{tpu_custom_call.1} parent=31 // pred_check_branch
          %198 = sbr.rel (%p196) target = $region36
        $region35: #{tpu_custom_call.1} parent=31 // pred_region
          %199 = dma.done [#allocation3], 1536
        $region36: #{tpu_custom_call.1} parent=31 // pred_fallthru
          _
        %s200 = sand.u32 %s21, 1
        %s201 = scalar_lea.sflag [#allocation6], %s200
        %s202 = sand.u32 %s50, 1
        %s203 = smul.addr %s202, 384
        %s204 = scalar_lea.vmem [#allocation5], %s203
        // Predicated region
        $region37: #{tpu_custom_call.1} parent=31 // pred_check
          %p205 = pneg %p63
        $region38: #{tpu_custom_call.1} parent=31 // pred_check_branch
          %207 = sbr.rel (%p205) target = $region40
        $region39: #{tpu_custom_call.1} parent=31 // pred_region
          %208 = dma.done %s201, 6144
        $region40: #{tpu_custom_call.1} parent=31 // pred_fallthru
          _
        %s209 = sand.u32 %s21, 1
        %s210 = scalar_lea.sflag [#allocation6], %s209
        %s211 = sand.u32 %s76, 1
        %s212 = smul.addr %s211, 384
        %s213 = scalar_lea.vmem [#allocation7], %s212
        // Predicated region
        $region41: #{tpu_custom_call.1} parent=31 // pred_check
          %p214 = pneg %p89
        $region42: #{tpu_custom_call.1} parent=31 // pred_check_branch
          %216 = sbr.rel (%p214) target = $region44
        $region43: #{tpu_custom_call.1} parent=31 // pred_region
          %217 = dma.done %s210, 6144
        $region44: #{tpu_custom_call.1} parent=31 // pred_fallthru
          _
        %p218 = pneg %p37
        %p219 = pneg %p34
        %s220 = sand.u32 %s21, 1
        %s221 = scalar_lea.sflag [#allocation6], %s220
        %s222 = sand.u32 %s50, 1
        %s223 = smul.addr %s222, 384
        %s224 = scalar_lea.vmem [#allocation5], %s223
        %p225 = pneg %p63
        %p226 = pneg %p60
        %s227 = sand.u32 %s21, 1
        %s228 = scalar_lea.sflag [#allocation6], %s227
        %s229 = sand.u32 %s76, 1
        %s230 = smul.addr %s229, 384
        %s231 = scalar_lea.vmem [#allocation7], %s230
        %p232 = pneg %p89
        %p233 = pneg %p86
        %p234 = pneg %p115
        %p235 = pneg %p112
        %s236 = sand.u32 %s102, 1
        %s237 = scalar_lea.sflag [#allocation4], %s236
        %s238 = sand.u32 %s102, 1
        %s239 = smul.addr %s238, 384
        %s240 = scalar_lea.vmem [#allocation8], %s239
        %s241 = smul.u32 2, %s21
        %s242 = smul.u32 2, %s21
        %s243 = smul.u32 2, %s21
        %v244 = vld [vmem:[#allocation2] ss:$4 sm:$0xff]
        %s245 = scalar_lea.vmem [#allocation2], 32
        %v246 = vld [vmem:[%s245] ss:$4 sm:$0xff]
        %s247 = scalar_lea.vmem [#allocation2], 64
        %v248 = vld [vmem:[%s247] ss:$4 sm:$0xff]
        %s249 = scalar_lea.vmem [#allocation2], 1
        %v250 = vld [vmem:[%s249] ss:$4 sm:$0xff]
        %s251 = scalar_lea.vmem [#allocation2], 33
        %v252 = vld [vmem:[%s251] ss:$4 sm:$0xff]
        %s253 = scalar_lea.vmem [#allocation2], 65
        %v254 = vld [vmem:[%s253] ss:$4 sm:$0xff]
        %s255 = scalar_lea.vmem [#allocation2], 2
        %v256 = vld [vmem:[%s255] ss:$4 sm:$0xff]
        %s257 = scalar_lea.vmem [#allocation2], 34
        %v258 = vld [vmem:[%s257] ss:$4 sm:$0xff]
        %s259 = scalar_lea.vmem [#allocation2], 66
        %v260 = vld [vmem:[%s259] ss:$4 sm:$0xff]
        %v261 = vld [vmem:[%s213] sm:$0xff]
        %v262 = vld [vmem:[%s213 + $0x8] sm:$0xff]
        %v263 = vld [vmem:[%s213 + $0x10] sm:$0xff]
        %v264 = vld [vmem:[%s213 + $0x18] sm:$0xff]
        %v265 = vld [vmem:[%s213 + $0x20] sm:$0xff]
        %v266 = vld [vmem:[%s213 + $0x28] sm:$0xff]
        %v267 = vld [vmem:[%s213 + $0x30] sm:$0xff]
        %v268 = vld [vmem:[%s213 + $0x38] sm:$0xff]
        %v269 = vld [vmem:[%s213 + $0x40] sm:$0xff]
        %v270 = vld [vmem:[%s213 + $0x48] sm:$0xff]
        %v271 = vld [vmem:[%s213 + $0x50] sm:$0xff]
        %v272 = vld [vmem:[%s213 + $0x58] sm:$0xff]
        %v273 = vld [vmem:[%s213 + $0x60] sm:$0xff]
        %v274 = vld [vmem:[%s213 + $0x68] sm:$0xff]
        %v275 = vld [vmem:[%s213 + $0x70] sm:$0xff]
        %v276 = vld [vmem:[%s213 + $0x78] sm:$0xff]
        %v277 = vld [vmem:[%s213 + $0x80] sm:$0xff]
        %v278 = vld [vmem:[%s213 + $0x88] sm:$0xff]
        %v279 = vld [vmem:[%s213 + $0x90] sm:$0xff]
        %v280 = vld [vmem:[%s213 + $0x98] sm:$0xff]
        %v281 = vld [vmem:[%s213 + $0xa0] sm:$0xff]
        %v282 = vld [vmem:[%s213 + $0xa8] sm:$0xff]
        %v283 = vld [vmem:[%s213 + $0xb0] sm:$0xff]
        %v284 = vld [vmem:[%s213 + $0xb8] sm:$0xff]
        %v285 = vld [vmem:[%s213 + $0xc0] sm:$0xff]
        %v286 = vld [vmem:[%s213 + $0xc8] sm:$0xff]
        %v287 = vld [vmem:[%s213 + $0xd0] sm:$0xff]
        %v288 = vld [vmem:[%s213 + $0xd8] sm:$0xff]
        %v289 = vld [vmem:[%s213 + $0xe0] sm:$0xff]
        %v290 = vld [vmem:[%s213 + $0xe8] sm:$0xff]
        %v291 = vld [vmem:[%s213 + $0xf0] sm:$0xff]
        %v292 = vld [vmem:[%s213 + $0xf8] sm:$0xff]
        %v293 = vld [vmem:[%s213 + $0x100] sm:$0xff]
        %v294 = vld [vmem:[%s213 + $0x108] sm:$0xff]
        %v295 = vld [vmem:[%s213 + $0x110] sm:$0xff]
        %v296 = vld [vmem:[%s213 + $0x118] sm:$0xff]
        %v297 = vld [vmem:[%s213 + $0x120] sm:$0xff]
        %v298 = vld [vmem:[%s213 + $0x128] sm:$0xff]
        %v299 = vld [vmem:[%s213 + $0x130] sm:$0xff]
        %v300 = vld [vmem:[%s213 + $0x138] sm:$0xff]
        %v301 = vld [vmem:[%s213 + $0x140] sm:$0xff]
        %v302 = vld [vmem:[%s213 + $0x148] sm:$0xff]
        %v303 = vld [vmem:[%s213 + $0x150] sm:$0xff]
        %v304 = vld [vmem:[%s213 + $0x158] sm:$0xff]
        %v305 = vld [vmem:[%s213 + $0x160] sm:$0xff]
        %v306 = vld [vmem:[%s213 + $0x168] sm:$0xff]
        %v307 = vld [vmem:[%s213 + $0x170] sm:$0xff]
        %v308 = vld [vmem:[%s213 + $0x178] sm:$0xff]
        %v309 = vld [vmem:[%s204] sm:$0xff]
        %v310 = vld [vmem:[%s204 + $0x8] sm:$0xff]
        %v311 = vld [vmem:[%s204 + $0x10] sm:$0xff]
        %v312 = vld [vmem:[%s204 + $0x18] sm:$0xff]
        %v313 = vld [vmem:[%s204 + $0x20] sm:$0xff]
        %v314 = vld [vmem:[%s204 + $0x28] sm:$0xff]
        %v315 = vld [vmem:[%s204 + $0x30] sm:$0xff]
        %v316 = vld [vmem:[%s204 + $0x38] sm:$0xff]
        %v317 = vld [vmem:[%s204 + $0x40] sm:$0xff]
        %v318 = vld [vmem:[%s204 + $0x48] sm:$0xff]
        %v319 = vld [vmem:[%s204 + $0x50] sm:$0xff]
        %v320 = vld [vmem:[%s204 + $0x58] sm:$0xff]
        %v321 = vld [vmem:[%s204 + $0x60] sm:$0xff]
        %v322 = vld [vmem:[%s204 + $0x68] sm:$0xff]
        %v323 = vld [vmem:[%s204 + $0x70] sm:$0xff]
        %v324 = vld [vmem:[%s204 + $0x78] sm:$0xff]
        %v325 = vld [vmem:[%s204 + $0x80] sm:$0xff]
        %v326 = vld [vmem:[%s204 + $0x88] sm:$0xff]
        %v327 = vld [vmem:[%s204 + $0x90] sm:$0xff]
        %v328 = vld [vmem:[%s204 + $0x98] sm:$0xff]
        %v329 = vld [vmem:[%s204 + $0xa0] sm:$0xff]
        %v330 = vld [vmem:[%s204 + $0xa8] sm:$0xff]
        %v331 = vld [vmem:[%s204 + $0xb0] sm:$0xff]
        %v332 = vld [vmem:[%s204 + $0xb8] sm:$0xff]
        %v333 = vld [vmem:[%s204 + $0xc0] sm:$0xff]
        %v334 = vld [vmem:[%s204 + $0xc8] sm:$0xff]
        %v335 = vld [vmem:[%s204 + $0xd0] sm:$0xff]
        %v336 = vld [vmem:[%s204 + $0xd8] sm:$0xff]
        %v337 = vld [vmem:[%s204 + $0xe0] sm:$0xff]
        %v338 = vld [vmem:[%s204 + $0xe8] sm:$0xff]
        %v339 = vld [vmem:[%s204 + $0xf0] sm:$0xff]
        %v340 = vld [vmem:[%s204 + $0xf8] sm:$0xff]
        %v341 = vld [vmem:[%s204 + $0x100] sm:$0xff]
        %v342 = vld [vmem:[%s204 + $0x108] sm:$0xff]
        %v343 = vld [vmem:[%s204 + $0x110] sm:$0xff]
        %v344 = vld [vmem:[%s204 + $0x118] sm:$0xff]
        %v345 = vld [vmem:[%s204 + $0x120] sm:$0xff]
        %v346 = vld [vmem:[%s204 + $0x128] sm:$0xff]
        %v347 = vld [vmem:[%s204 + $0x130] sm:$0xff]
        %v348 = vld [vmem:[%s204 + $0x138] sm:$0xff]
        %v349 = vld [vmem:[%s204 + $0x140] sm:$0xff]
        %v350 = vld [vmem:[%s204 + $0x148] sm:$0xff]
        %v351 = vld [vmem:[%s204 + $0x150] sm:$0xff]
        %v352 = vld [vmem:[%s204 + $0x158] sm:$0xff]
        %v353 = vld [vmem:[%s204 + $0x160] sm:$0xff]
        %v354 = vld [vmem:[%s204 + $0x168] sm:$0xff]
        %v355 = vld [vmem:[%s204 + $0x170] sm:$0xff]
        %v356 = vld [vmem:[%s204 + $0x178] sm:$0xff]
        %v360 = vlaneseq
        %v361 = vshrl.u32 %v360, 7
        %v362 = vsub.s32 0, %v361
        %v363 = vrot.slane %v244, %v362
        %v364 = vlaneseq
        %v365 = vshrl.u32 %v364, 7
        %v366 = vsub.s32 1, %v365
        %v367 = vrot.slane %v244, %v366
        %v368 = vlaneseq
        %v369 = vshrl.u32 %v368, 7
        %v370 = vsub.s32 2, %v369
        %v371 = vrot.slane %v244, %v370
        %v372 = vlaneseq
        %v373 = vshrl.u32 %v372, 7
        %v374 = vsub.s32 3, %v373
        %v375 = vrot.slane %v244, %v374
        %v376 = vlaneseq
        %v377 = vshrl.u32 %v376, 7
        %v378 = vsub.s32 4, %v377
        %v379 = vrot.slane %v244, %v378
        %v380 = vlaneseq
        %v381 = vshrl.u32 %v380, 7
        %v382 = vsub.s32 5, %v381
        %v383 = vrot.slane %v244, %v382
        %v384 = vlaneseq
        %v385 = vshrl.u32 %v384, 7
        %v386 = vsub.s32 6, %v385
        %v387 = vrot.slane %v244, %v386
        %v388 = vlaneseq
        %v389 = vshrl.u32 %v388, 7
        %v390 = vsub.s32 7, %v389
        %v391 = vrot.slane %v244, %v390
        %v392 = vlaneseq
        %v393 = vshrl.u32 %v392, 7
        %v394 = vsub.s32 0, %v393
        %v395 = vrot.slane %v246, %v394
        %v396 = vlaneseq
        %v397 = vshrl.u32 %v396, 7
        %v398 = vsub.s32 1, %v397
        %v399 = vrot.slane %v246, %v398
        %v400 = vlaneseq
        %v401 = vshrl.u32 %v400, 7
        %v402 = vsub.s32 2, %v401
        %v403 = vrot.slane %v246, %v402
        %v404 = vlaneseq
        %v405 = vshrl.u32 %v404, 7
        %v406 = vsub.s32 3, %v405
        %v407 = vrot.slane %v246, %v406
        %v408 = vlaneseq
        %v409 = vshrl.u32 %v408, 7
        %v410 = vsub.s32 4, %v409
        %v411 = vrot.slane %v246, %v410
        %v412 = vlaneseq
        %v413 = vshrl.u32 %v412, 7
        %v414 = vsub.s32 5, %v413
        %v415 = vrot.slane %v246, %v414
        %v416 = vlaneseq
        %v417 = vshrl.u32 %v416, 7
        %v418 = vsub.s32 6, %v417
        %v419 = vrot.slane %v246, %v418
        %v420 = vlaneseq
        %v421 = vshrl.u32 %v420, 7
        %v422 = vsub.s32 7, %v421
        %v423 = vrot.slane %v246, %v422
        %v424 = vlaneseq
        %v425 = vshrl.u32 %v424, 7
        %v426 = vsub.s32 0, %v425
        %v427 = vrot.slane %v248, %v426
        %v428 = vlaneseq
        %v429 = vshrl.u32 %v428, 7
        %v430 = vsub.s32 1, %v429
        %v431 = vrot.slane %v248, %v430
        %v432 = vlaneseq
        %v433 = vshrl.u32 %v432, 7
        %v434 = vsub.s32 2, %v433
        %v435 = vrot.slane %v248, %v434
        %v436 = vlaneseq
        %v437 = vshrl.u32 %v436, 7
        %v438 = vsub.s32 3, %v437
        %v439 = vrot.slane %v248, %v438
        %v440 = vlaneseq
        %v441 = vshrl.u32 %v440, 7
        %v442 = vsub.s32 4, %v441
        %v443 = vrot.slane %v248, %v442
        %v444 = vlaneseq
        %v445 = vshrl.u32 %v444, 7
        %v446 = vsub.s32 5, %v445
        %v447 = vrot.slane %v248, %v446
        %v448 = vlaneseq
        %v449 = vshrl.u32 %v448, 7
        %v450 = vsub.s32 6, %v449
        %v451 = vrot.slane %v248, %v450
        %v452 = vlaneseq
        %v453 = vshrl.u32 %v452, 7
        %v454 = vsub.s32 7, %v453
        %v455 = vrot.slane %v248, %v454
        %v480 = vmul.f32 %v261, %v363
        %v481 = vmul.f32 %v262, %v367
        %v482 = vmul.f32 %v263, %v371
        %v483 = vmul.f32 %v264, %v375
        %v484 = vmul.f32 %v265, %v379
        %v485 = vmul.f32 %v266, %v383
        %v486 = vmul.f32 %v267, %v387
        %v487 = vmul.f32 %v268, %v391
        %v488 = vmul.f32 %v269, %v395
        %v489 = vmul.f32 %v270, %v399
        %v490 = vmul.f32 %v271, %v403
        %v491 = vmul.f32 %v272, %v407
        %v492 = vmul.f32 %v273, %v411
        %v493 = vmul.f32 %v274, %v415
        %v494 = vmul.f32 %v275, %v419
        %v495 = vmul.f32 %v276, %v423
        %v496 = vmul.f32 %v277, %v427
        %v497 = vmul.f32 %v278, %v431
        %v498 = vmul.f32 %v279, %v435
        %v499 = vmul.f32 %v280, %v439
        %v500 = vmul.f32 %v281, %v443
        %v501 = vmul.f32 %v282, %v447
        %v502 = vmul.f32 %v283, %v451
        %v503 = vmul.f32 %v284, %v455
        %v504 = vmul.f32 %v285, %v363
        %v505 = vmul.f32 %v286, %v367
        %v506 = vmul.f32 %v287, %v371
        %v507 = vmul.f32 %v288, %v375
        %v508 = vmul.f32 %v289, %v379
        %v509 = vmul.f32 %v290, %v383
        %v510 = vmul.f32 %v291, %v387
        %v511 = vmul.f32 %v292, %v391
        %v512 = vmul.f32 %v293, %v395
        %v513 = vmul.f32 %v294, %v399
        %v514 = vmul.f32 %v295, %v403
        %v515 = vmul.f32 %v296, %v407
        %v516 = vmul.f32 %v297, %v411
        %v517 = vmul.f32 %v298, %v415
        %v518 = vmul.f32 %v299, %v419
        %v519 = vmul.f32 %v300, %v423
        %v520 = vmul.f32 %v301, %v427
        %v521 = vmul.f32 %v302, %v431
        %v522 = vmul.f32 %v303, %v435
        %v523 = vmul.f32 %v304, %v439
        %v524 = vmul.f32 %v305, %v443
        %v525 = vmul.f32 %v306, %v447
        %v526 = vmul.f32 %v307, %v451
        %v527 = vmul.f32 %v308, %v455
        %528 = vrot.lane.b32.xlu0 %v480, 1
        %v529 = vpop.permute.xlu0 %528
        %530 = vrot.lane.b32.xlu0 %v504, 1
        %v531 = vpop.permute.xlu0 %530
        %532 = vrot.lane.b32.xlu0 %v481, 1
        %v533 = vpop.permute.xlu0 %532
        %534 = vrot.lane.b32.xlu0 %v505, 1
        %v535 = vpop.permute.xlu0 %534
        %536 = vrot.lane.b32.xlu0 %v482, 1
        %v537 = vpop.permute.xlu0 %536
        %538 = vrot.lane.b32.xlu0 %v506, 1
        %v539 = vpop.permute.xlu0 %538
        %540 = vrot.lane.b32.xlu0 %v483, 1
        %v541 = vpop.permute.xlu0 %540
        %542 = vrot.lane.b32.xlu0 %v507, 1
        %v543 = vpop.permute.xlu0 %542
        %544 = vrot.lane.b32.xlu0 %v484, 1
        %v545 = vpop.permute.xlu0 %544
        %546 = vrot.lane.b32.xlu0 %v508, 1
        %v547 = vpop.permute.xlu0 %546
        %548 = vrot.lane.b32.xlu0 %v485, 1
        %v549 = vpop.permute.xlu0 %548
        %550 = vrot.lane.b32.xlu0 %v509, 1
        %v551 = vpop.permute.xlu0 %550
        %552 = vrot.lane.b32.xlu0 %v486, 1
        %v553 = vpop.permute.xlu0 %552
        %554 = vrot.lane.b32.xlu0 %v510, 1
        %v555 = vpop.permute.xlu0 %554
        %556 = vrot.lane.b32.xlu0 %v487, 1
        %v557 = vpop.permute.xlu0 %556
        %558 = vrot.lane.b32.xlu0 %v511, 1
        %v559 = vpop.permute.xlu0 %558
        %560 = vrot.lane.b32.xlu0 %v488, 1
        %v561 = vpop.permute.xlu0 %560
        %562 = vrot.lane.b32.xlu0 %v512, 1
        %v563 = vpop.permute.xlu0 %562
        %564 = vrot.lane.b32.xlu0 %v489, 1
        %v565 = vpop.permute.xlu0 %564
        %566 = vrot.lane.b32.xlu0 %v513, 1
        %v567 = vpop.permute.xlu0 %566
        %568 = vrot.lane.b32.xlu0 %v490, 1
        %v569 = vpop.permute.xlu0 %568
        %570 = vrot.lane.b32.xlu0 %v514, 1
        %v571 = vpop.permute.xlu0 %570
        %572 = vrot.lane.b32.xlu0 %v491, 1
        %v573 = vpop.permute.xlu0 %572
        %574 = vrot.lane.b32.xlu0 %v515, 1
        %v575 = vpop.permute.xlu0 %574
        %576 = vrot.lane.b32.xlu0 %v492, 1
        %v577 = vpop.permute.xlu0 %576
        %578 = vrot.lane.b32.xlu0 %v516, 1
        %v579 = vpop.permute.xlu0 %578
        %580 = vrot.lane.b32.xlu0 %v493, 1
        %v581 = vpop.permute.xlu0 %580
        %582 = vrot.lane.b32.xlu0 %v517, 1
        %v583 = vpop.permute.xlu0 %582
        %584 = vrot.lane.b32.xlu0 %v494, 1
        %v585 = vpop.permute.xlu0 %584
        %586 = vrot.lane.b32.xlu0 %v518, 1
        %v587 = vpop.permute.xlu0 %586
        %588 = vrot.lane.b32.xlu0 %v495, 1
        %v589 = vpop.permute.xlu0 %588
        %590 = vrot.lane.b32.xlu0 %v519, 1
        %v591 = vpop.permute.xlu0 %590
        %592 = vrot.lane.b32.xlu0 %v496, 1
        %v593 = vpop.permute.xlu0 %592
        %594 = vrot.lane.b32.xlu0 %v520, 1
        %v595 = vpop.permute.xlu0 %594
        %596 = vrot.lane.b32.xlu0 %v497, 1
        %v597 = vpop.permute.xlu0 %596
        %598 = vrot.lane.b32.xlu0 %v521, 1
        %v599 = vpop.permute.xlu0 %598
        %600 = vrot.lane.b32.xlu0 %v498, 1
        %v601 = vpop.permute.xlu0 %600
        %602 = vrot.lane.b32.xlu0 %v522, 1
        %v603 = vpop.permute.xlu0 %602
        %604 = vrot.lane.b32.xlu0 %v499, 1
        %v605 = vpop.permute.xlu0 %604
        %606 = vrot.lane.b32.xlu0 %v523, 1
        %v607 = vpop.permute.xlu0 %606
        %608 = vrot.lane.b32.xlu0 %v500, 1
        %v609 = vpop.permute.xlu0 %608
        %610 = vrot.lane.b32.xlu0 %v524, 1
        %v611 = vpop.permute.xlu0 %610
        %612 = vrot.lane.b32.xlu0 %v501, 1
        %v613 = vpop.permute.xlu0 %612
        %614 = vrot.lane.b32.xlu0 %v525, 1
        %v615 = vpop.permute.xlu0 %614
        %616 = vrot.lane.b32.xlu0 %v502, 1
        %v617 = vpop.permute.xlu0 %616
        %618 = vrot.lane.b32.xlu0 %v526, 1
        %v619 = vpop.permute.xlu0 %618
        %620 = vrot.lane.b32.xlu0 %v503, 1
        %v621 = vpop.permute.xlu0 %620
        %622 = vrot.lane.b32.xlu0 %v527, 1
        %v623 = vpop.permute.xlu0 %622
        %v624 = vlaneseq
        %v625 = vand.u32 %v624, 127
        %vm626 = vcmp.lt.s32.totalorder %v625, 1
        %v627 = vsel %vm626, %v617, %v621
        %v628 = vsel %vm626, %v619, %v623
        %v629 = vsel %vm626, %v613, %v617
        %v630 = vsel %vm626, %v615, %v619
        %v631 = vsel %vm626, %v609, %v613
        %v632 = vsel %vm626, %v611, %v615
        %v633 = vsel %vm626, %v605, %v609
        %v634 = vsel %vm626, %v607, %v611
        %v635 = vsel %vm626, %v601, %v605
        %v636 = vsel %vm626, %v603, %v607
        %v637 = vsel %vm626, %v597, %v601
        %v638 = vsel %vm626, %v599, %v603
        %v639 = vsel %vm626, %v593, %v597
        %v640 = vsel %vm626, %v595, %v599
        %v641 = vsel %vm626, %v589, %v593
        %v642 = vsel %vm626, %v591, %v595
        %v643 = vsel %vm626, %v585, %v589
        %v644 = vsel %vm626, %v587, %v591
        %v645 = vsel %vm626, %v581, %v585
        %v646 = vsel %vm626, %v583, %v587
        %v647 = vsel %vm626, %v577, %v581
        %v648 = vsel %vm626, %v579, %v583
        %v649 = vsel %vm626, %v573, %v577
        %v650 = vsel %vm626, %v575, %v579
        %v651 = vsel %vm626, %v569, %v573
        %v652 = vsel %vm626, %v571, %v575
        %v653 = vsel %vm626, %v565, %v569
        %v654 = vsel %vm626, %v567, %v571
        %v655 = vsel %vm626, %v561, %v565
        %v656 = vsel %vm626, %v563, %v567
        %v657 = vsel %vm626, %v557, %v561
        %v658 = vsel %vm626, %v559, %v563
        %v659 = vsel %vm626, %v553, %v557
        %v660 = vsel %vm626, %v555, %v559
        %v661 = vsel %vm626, %v549, %v553
        %v662 = vsel %vm626, %v551, %v555
        %v663 = vsel %vm626, %v545, %v549
        %v664 = vsel %vm626, %v547, %v551
        %v665 = vsel %vm626, %v541, %v545
        %v666 = vsel %vm626, %v543, %v547
        %v667 = vsel %vm626, %v537, %v541
        %v668 = vsel %vm626, %v539, %v543
        %v669 = vsel %vm626, %v533, %v537
        %v670 = vsel %vm626, %v535, %v539
        %v671 = vsel %vm626, %v529, %v533
        %v672 = vsel %vm626, %v531, %v535
        %v673 = vsel %vm626, %v621, %v529
        %v674 = vsel %vm626, %v623, %v531
        %v675 = vadd.f32 %v480, %v673
        %v676 = vadd.f32 %v481, %v671
        %v677 = vadd.f32 %v482, %v669
        %v678 = vadd.f32 %v483, %v667
        %v679 = vadd.f32 %v484, %v665
        %v680 = vadd.f32 %v485, %v663
        %v681 = vadd.f32 %v486, %v661
        %v682 = vadd.f32 %v487, %v659
        %v683 = vadd.f32 %v488, %v657
        %v684 = vadd.f32 %v489, %v655
        %v685 = vadd.f32 %v490, %v653
        %v686 = vadd.f32 %v491, %v651
        %v687 = vadd.f32 %v492, %v649
        %v688 = vadd.f32 %v493, %v647
        %v689 = vadd.f32 %v494, %v645
        %v690 = vadd.f32 %v495, %v643
        %v691 = vadd.f32 %v496, %v641
        %v692 = vadd.f32 %v497, %v639
        %v693 = vadd.f32 %v498, %v637
        %v694 = vadd.f32 %v499, %v635
        %v695 = vadd.f32 %v500, %v633
        %v696 = vadd.f32 %v501, %v631
        %v697 = vadd.f32 %v502, %v629
        %v698 = vadd.f32 %v503, %v627
        %v699 = vadd.f32 %v504, %v674
        %v700 = vadd.f32 %v505, %v672
        %v701 = vadd.f32 %v506, %v670
        %v702 = vadd.f32 %v507, %v668
        %v703 = vadd.f32 %v508, %v666
        %v704 = vadd.f32 %v509, %v664
        %v705 = vadd.f32 %v510, %v662
        %v706 = vadd.f32 %v511, %v660
        %v707 = vadd.f32 %v512, %v658
        %v708 = vadd.f32 %v513, %v656
        %v709 = vadd.f32 %v514, %v654
        %v710 = vadd.f32 %v515, %v652
        %v711 = vadd.f32 %v516, %v650
        %v712 = vadd.f32 %v517, %v648
        %v713 = vadd.f32 %v518, %v646
        %v714 = vadd.f32 %v519, %v644
        %v715 = vadd.f32 %v520, %v642
        %v716 = vadd.f32 %v521, %v640
        %v717 = vadd.f32 %v522, %v638
        %v718 = vadd.f32 %v523, %v636
        %v719 = vadd.f32 %v524, %v634
        %v720 = vadd.f32 %v525, %v632
        %v721 = vadd.f32 %v526, %v630
        %v722 = vadd.f32 %v527, %v628
        %723 = vrot.lane.b32.xlu0 %v480, 2
        %v724 = vpop.permute.xlu0 %723
        %725 = vrot.lane.b32.xlu0 %v504, 2
        %v726 = vpop.permute.xlu0 %725
        %727 = vrot.lane.b32.xlu0 %v481, 2
        %v728 = vpop.permute.xlu0 %727
        %729 = vrot.lane.b32.xlu0 %v505, 2
        %v730 = vpop.permute.xlu0 %729
        %731 = vrot.lane.b32.xlu0 %v482, 2
        %v732 = vpop.permute.xlu0 %731
        %733 = vrot.lane.b32.xlu0 %v506, 2
        %v734 = vpop.permute.xlu0 %733
        %735 = vrot.lane.b32.xlu0 %v483, 2
        %v736 = vpop.permute.xlu0 %735
        %737 = vrot.lane.b32.xlu0 %v507, 2
        %v738 = vpop.permute.xlu0 %737
        %739 = vrot.lane.b32.xlu0 %v484, 2
        %v740 = vpop.permute.xlu0 %739
        %741 = vrot.lane.b32.xlu0 %v508, 2
        %v742 = vpop.permute.xlu0 %741
        %743 = vrot.lane.b32.xlu0 %v485, 2
        %v744 = vpop.permute.xlu0 %743
        %745 = vrot.lane.b32.xlu0 %v509, 2
        %v746 = vpop.permute.xlu0 %745
        %747 = vrot.lane.b32.xlu0 %v486, 2
        %v748 = vpop.permute.xlu0 %747
        %749 = vrot.lane.b32.xlu0 %v510, 2
        %v750 = vpop.permute.xlu0 %749
        %751 = vrot.lane.b32.xlu0 %v487, 2
        %v752 = vpop.permute.xlu0 %751
        %753 = vrot.lane.b32.xlu0 %v511, 2
        %v754 = vpop.permute.xlu0 %753
        %755 = vrot.lane.b32.xlu0 %v488, 2
        %v756 = vpop.permute.xlu0 %755
        %757 = vrot.lane.b32.xlu0 %v512, 2
        %v758 = vpop.permute.xlu0 %757
        %759 = vrot.lane.b32.xlu0 %v489, 2
        %v760 = vpop.permute.xlu0 %759
        %761 = vrot.lane.b32.xlu0 %v513, 2
        %v762 = vpop.permute.xlu0 %761
        %763 = vrot.lane.b32.xlu0 %v490, 2
        %v764 = vpop.permute.xlu0 %763
        %765 = vrot.lane.b32.xlu0 %v514, 2
        %v766 = vpop.permute.xlu0 %765
        %767 = vrot.lane.b32.xlu0 %v491, 2
        %v768 = vpop.permute.xlu0 %767
        %769 = vrot.lane.b32.xlu0 %v515, 2
        %v770 = vpop.permute.xlu0 %769
        %771 = vrot.lane.b32.xlu0 %v492, 2
        %v772 = vpop.permute.xlu0 %771
        %773 = vrot.lane.b32.xlu0 %v516, 2
        %v774 = vpop.permute.xlu0 %773
        %775 = vrot.lane.b32.xlu0 %v493, 2
        %v776 = vpop.permute.xlu0 %775
        %777 = vrot.lane.b32.xlu0 %v517, 2
        %v778 = vpop.permute.xlu0 %777
        %779 = vrot.lane.b32.xlu0 %v494, 2
        %v780 = vpop.permute.xlu0 %779
        %781 = vrot.lane.b32.xlu0 %v518, 2
        %v782 = vpop.permute.xlu0 %781
        %783 = vrot.lane.b32.xlu0 %v495, 2
        %v784 = vpop.permute.xlu0 %783
        %785 = vrot.lane.b32.xlu0 %v519, 2
        %v786 = vpop.permute.xlu0 %785
        %787 = vrot.lane.b32.xlu0 %v496, 2
        %v788 = vpop.permute.xlu0 %787
        %789 = vrot.lane.b32.xlu0 %v520, 2
        %v790 = vpop.permute.xlu0 %789
        %791 = vrot.lane.b32.xlu0 %v497, 2
        %v792 = vpop.permute.xlu0 %791
        %793 = vrot.lane.b32.xlu0 %v521, 2
        %v794 = vpop.permute.xlu0 %793
        %795 = vrot.lane.b32.xlu0 %v498, 2
        %v796 = vpop.permute.xlu0 %795
        %797 = vrot.lane.b32.xlu0 %v522, 2
        %v798 = vpop.permute.xlu0 %797
        %799 = vrot.lane.b32.xlu0 %v499, 2
        %v800 = vpop.permute.xlu0 %799
        %801 = vrot.lane.b32.xlu0 %v523, 2
        %v802 = vpop.permute.xlu0 %801
        %803 = vrot.lane.b32.xlu0 %v500, 2
        %v804 = vpop.permute.xlu0 %803
        %805 = vrot.lane.b32.xlu0 %v524, 2
        %v806 = vpop.permute.xlu0 %805
        %807 = vrot.lane.b32.xlu0 %v501, 2
        %v808 = vpop.permute.xlu0 %807
        %809 = vrot.lane.b32.xlu0 %v525, 2
        %v810 = vpop.permute.xlu0 %809
        %811 = vrot.lane.b32.xlu0 %v502, 2
        %v812 = vpop.permute.xlu0 %811
        %813 = vrot.lane.b32.xlu0 %v526, 2
        %v814 = vpop.permute.xlu0 %813
        %815 = vrot.lane.b32.xlu0 %v503, 2
        %v816 = vpop.permute.xlu0 %815
        %817 = vrot.lane.b32.xlu0 %v527, 2
        %v818 = vpop.permute.xlu0 %817
        %vm819 = vcmp.lt.s32.totalorder %v625, 2
        %v820 = vsel %vm819, %v812, %v816
        %v821 = vsel %vm819, %v814, %v818
        %v822 = vsel %vm819, %v808, %v812
        %v823 = vsel %vm819, %v810, %v814
        %v824 = vsel %vm819, %v804, %v808
        %v825 = vsel %vm819, %v806, %v810
        %v826 = vsel %vm819, %v800, %v804
        %v827 = vsel %vm819, %v802, %v806
        %v828 = vsel %vm819, %v796, %v800
        %v829 = vsel %vm819, %v798, %v802
        %v830 = vsel %vm819, %v792, %v796
        %v831 = vsel %vm819, %v794, %v798
        %v832 = vsel %vm819, %v788, %v792
        %v833 = vsel %vm819, %v790, %v794
        %v834 = vsel %vm819, %v784, %v788
        %v835 = vsel %vm819, %v786, %v790
        %v836 = vsel %vm819, %v780, %v784
        %v837 = vsel %vm819, %v782, %v786
        %v838 = vsel %vm819, %v776, %v780
        %v839 = vsel %vm819, %v778, %v782
        %v840 = vsel %vm819, %v772, %v776
        %v841 = vsel %vm819, %v774, %v778
        %v842 = vsel %vm819, %v768, %v772
        %v843 = vsel %vm819, %v770, %v774
        %v844 = vsel %vm819, %v764, %v768
        %v845 = vsel %vm819, %v766, %v770
        %v846 = vsel %vm819, %v760, %v764
        %v847 = vsel %vm819, %v762, %v766
        %v848 = vsel %vm819, %v756, %v760
        %v849 = vsel %vm819, %v758, %v762
        %v850 = vsel %vm819, %v752, %v756
        %v851 = vsel %vm819, %v754, %v758
        %v852 = vsel %vm819, %v748, %v752
        %v853 = vsel %vm819, %v750, %v754
        %v854 = vsel %vm819, %v744, %v748
        %v855 = vsel %vm819, %v746, %v750
        %v856 = vsel %vm819, %v740, %v744
        %v857 = vsel %vm819, %v742, %v746
        %v858 = vsel %vm819, %v736, %v740
        %v859 = vsel %vm819, %v738, %v742
        %v860 = vsel %vm819, %v732, %v736
        %v861 = vsel %vm819, %v734, %v738
        %v862 = vsel %vm819, %v728, %v732
        %v863 = vsel %vm819, %v730, %v734
        %v864 = vsel %vm819, %v724, %v728
        %v865 = vsel %vm819, %v726, %v730
        %v866 = vsel %vm819, %v816, %v724
        %v867 = vsel %vm819, %v818, %v726
        %v868 = vadd.f32 %v675, %v866
        %v869 = vadd.f32 %v676, %v864
        %v870 = vadd.f32 %v677, %v862
        %v871 = vadd.f32 %v678, %v860
        %v872 = vadd.f32 %v679, %v858
        %v873 = vadd.f32 %v680, %v856
        %v874 = vadd.f32 %v681, %v854
        %v875 = vadd.f32 %v682, %v852
        %v876 = vadd.f32 %v683, %v850
        %v877 = vadd.f32 %v684, %v848
        %v878 = vadd.f32 %v685, %v846
        %v879 = vadd.f32 %v686, %v844
        %v880 = vadd.f32 %v687, %v842
        %v881 = vadd.f32 %v688, %v840
        %v882 = vadd.f32 %v689, %v838
        %v883 = vadd.f32 %v690, %v836
        %v884 = vadd.f32 %v691, %v834
        %v885 = vadd.f32 %v692, %v832
        %v886 = vadd.f32 %v693, %v830
        %v887 = vadd.f32 %v694, %v828
        %v888 = vadd.f32 %v695, %v826
        %v889 = vadd.f32 %v696, %v824
        %v890 = vadd.f32 %v697, %v822
        %v891 = vadd.f32 %v698, %v820
        %v892 = vadd.f32 %v699, %v867
        %v893 = vadd.f32 %v700, %v865
        %v894 = vadd.f32 %v701, %v863
        %v895 = vadd.f32 %v702, %v861
        %v896 = vadd.f32 %v703, %v859
        %v897 = vadd.f32 %v704, %v857
        %v898 = vadd.f32 %v705, %v855
        %v899 = vadd.f32 %v706, %v853
        %v900 = vadd.f32 %v707, %v851
        %v901 = vadd.f32 %v708, %v849
        %v902 = vadd.f32 %v709, %v847
        %v903 = vadd.f32 %v710, %v845
        %v904 = vadd.f32 %v711, %v843
        %v905 = vadd.f32 %v712, %v841
        %v906 = vadd.f32 %v713, %v839
        %v907 = vadd.f32 %v714, %v837
        %v908 = vadd.f32 %v715, %v835
        %v909 = vadd.f32 %v716, %v833
        %v910 = vadd.f32 %v717, %v831
        %v911 = vadd.f32 %v718, %v829
        %v912 = vadd.f32 %v719, %v827
        %v913 = vadd.f32 %v720, %v825
        %v914 = vadd.f32 %v721, %v823
        %v915 = vadd.f32 %v722, %v821
        %v916 = vmax.f32 %v868, 0.0
        %v917 = vmax.f32 %v869, 0.0
        %v918 = vmax.f32 %v870, 0.0
        %v919 = vmax.f32 %v871, 0.0
        %v920 = vmax.f32 %v872, 0.0
        %v921 = vmax.f32 %v873, 0.0
        %v922 = vmax.f32 %v874, 0.0
        %v923 = vmax.f32 %v875, 0.0
        %v924 = vmax.f32 %v876, 0.0
        %v925 = vmax.f32 %v877, 0.0
        %v926 = vmax.f32 %v878, 0.0
        %v927 = vmax.f32 %v879, 0.0
        %v928 = vmax.f32 %v880, 0.0
        %v929 = vmax.f32 %v881, 0.0
        %v930 = vmax.f32 %v882, 0.0
        %v931 = vmax.f32 %v883, 0.0
        %v932 = vmax.f32 %v884, 0.0
        %v933 = vmax.f32 %v885, 0.0
        %v934 = vmax.f32 %v886, 0.0
        %v935 = vmax.f32 %v887, 0.0
        %v936 = vmax.f32 %v888, 0.0
        %v937 = vmax.f32 %v889, 0.0
        %v938 = vmax.f32 %v890, 0.0
        %v939 = vmax.f32 %v891, 0.0
        %v940 = vmax.f32 %v892, 0.0
        %v941 = vmax.f32 %v893, 0.0
        %v942 = vmax.f32 %v894, 0.0
        %v943 = vmax.f32 %v895, 0.0
        %v944 = vmax.f32 %v896, 0.0
        %v945 = vmax.f32 %v897, 0.0
        %v946 = vmax.f32 %v898, 0.0
        %v947 = vmax.f32 %v899, 0.0
        %v948 = vmax.f32 %v900, 0.0
        %v949 = vmax.f32 %v901, 0.0
        %v950 = vmax.f32 %v902, 0.0
        %v951 = vmax.f32 %v903, 0.0
        %v952 = vmax.f32 %v904, 0.0
        %v953 = vmax.f32 %v905, 0.0
        %v954 = vmax.f32 %v906, 0.0
        %v955 = vmax.f32 %v907, 0.0
        %v956 = vmax.f32 %v908, 0.0
        %v957 = vmax.f32 %v909, 0.0
        %v958 = vmax.f32 %v910, 0.0
        %v959 = vmax.f32 %v911, 0.0
        %v960 = vmax.f32 %v912, 0.0
        %v961 = vmax.f32 %v913, 0.0
        %v962 = vmax.f32 %v914, 0.0
        %v963 = vmax.f32 %v915, 0.0
        %v967 = vlaneseq
        %v968 = vshrl.u32 %v967, 7
        %v969 = vsub.s32 0, %v968
        %v970 = vrot.slane %v256, %v969
        %v971 = vlaneseq
        %v972 = vshrl.u32 %v971, 7
        %v973 = vsub.s32 1, %v972
        %v974 = vrot.slane %v256, %v973
        %v975 = vlaneseq
        %v976 = vshrl.u32 %v975, 7
        %v977 = vsub.s32 2, %v976
        %v978 = vrot.slane %v256, %v977
        %v979 = vlaneseq
        %v980 = vshrl.u32 %v979, 7
        %v981 = vsub.s32 3, %v980
        %v982 = vrot.slane %v256, %v981
        %v983 = vlaneseq
        %v984 = vshrl.u32 %v983, 7
        %v985 = vsub.s32 4, %v984
        %v986 = vrot.slane %v256, %v985
        %v987 = vlaneseq
        %v988 = vshrl.u32 %v987, 7
        %v989 = vsub.s32 5, %v988
        %v990 = vrot.slane %v256, %v989
        %v991 = vlaneseq
        %v992 = vshrl.u32 %v991, 7
        %v993 = vsub.s32 6, %v992
        %v994 = vrot.slane %v256, %v993
        %v995 = vlaneseq
        %v996 = vshrl.u32 %v995, 7
        %v997 = vsub.s32 7, %v996
        %v998 = vrot.slane %v256, %v997
        %v999 = vlaneseq
        %v1000 = vshrl.u32 %v999, 7
        %v1001 = vsub.s32 0, %v1000
        %v1002 = vrot.slane %v258, %v1001
        %v1003 = vlaneseq
        %v1004 = vshrl.u32 %v1003, 7
        %v1005 = vsub.s32 1, %v1004
        %v1006 = vrot.slane %v258, %v1005
        %v1007 = vlaneseq
        %v1008 = vshrl.u32 %v1007, 7
        %v1009 = vsub.s32 2, %v1008
        %v1010 = vrot.slane %v258, %v1009
        %v1011 = vlaneseq
        %v1012 = vshrl.u32 %v1011, 7
        %v1013 = vsub.s32 3, %v1012
        %v1014 = vrot.slane %v258, %v1013
        %v1015 = vlaneseq
        %v1016 = vshrl.u32 %v1015, 7
        %v1017 = vsub.s32 4, %v1016
        %v1018 = vrot.slane %v258, %v1017
        %v1019 = vlaneseq
        %v1020 = vshrl.u32 %v1019, 7
        %v1021 = vsub.s32 5, %v1020
        %v1022 = vrot.slane %v258, %v1021
        %v1023 = vlaneseq
        %v1024 = vshrl.u32 %v1023, 7
        %v1025 = vsub.s32 6, %v1024
        %v1026 = vrot.slane %v258, %v1025
        %v1027 = vlaneseq
        %v1028 = vshrl.u32 %v1027, 7
        %v1029 = vsub.s32 7, %v1028
        %v1030 = vrot.slane %v258, %v1029
        %v1031 = vlaneseq
        %v1032 = vshrl.u32 %v1031, 7
        %v1033 = vsub.s32 0, %v1032
        %v1034 = vrot.slane %v260, %v1033
        %v1035 = vlaneseq
        %v1036 = vshrl.u32 %v1035, 7
        %v1037 = vsub.s32 1, %v1036
        %v1038 = vrot.slane %v260, %v1037
        %v1039 = vlaneseq
        %v1040 = vshrl.u32 %v1039, 7
        %v1041 = vsub.s32 2, %v1040
        %v1042 = vrot.slane %v260, %v1041
        %v1043 = vlaneseq
        %v1044 = vshrl.u32 %v1043, 7
        %v1045 = vsub.s32 3, %v1044
        %v1046 = vrot.slane %v260, %v1045
        %v1047 = vlaneseq
        %v1048 = vshrl.u32 %v1047, 7
        %v1049 = vsub.s32 4, %v1048
        %v1050 = vrot.slane %v260, %v1049
        %v1051 = vlaneseq
        %v1052 = vshrl.u32 %v1051, 7
        %v1053 = vsub.s32 5, %v1052
        %v1054 = vrot.slane %v260, %v1053
        %v1055 = vlaneseq
        %v1056 = vshrl.u32 %v1055, 7
        %v1057 = vsub.s32 6, %v1056
        %v1058 = vrot.slane %v260, %v1057
        %v1059 = vlaneseq
        %v1060 = vshrl.u32 %v1059, 7
        %v1061 = vsub.s32 7, %v1060
        %v1062 = vrot.slane %v260, %v1061
        %v1087 = vmul.f32 %v916, %v970
        %v1088 = vmul.f32 %v917, %v974
        %v1089 = vmul.f32 %v918, %v978
        %v1090 = vmul.f32 %v919, %v982
        %v1091 = vmul.f32 %v920, %v986
        %v1092 = vmul.f32 %v921, %v990
        %v1093 = vmul.f32 %v922, %v994
        %v1094 = vmul.f32 %v923, %v998
        %v1095 = vmul.f32 %v924, %v1002
        %v1096 = vmul.f32 %v925, %v1006
        %v1097 = vmul.f32 %v926, %v1010
        %v1098 = vmul.f32 %v927, %v1014
        %v1099 = vmul.f32 %v928, %v1018
        %v1100 = vmul.f32 %v929, %v1022
        %v1101 = vmul.f32 %v930, %v1026
        %v1102 = vmul.f32 %v931, %v1030
        %v1103 = vmul.f32 %v932, %v1034
        %v1104 = vmul.f32 %v933, %v1038
        %v1105 = vmul.f32 %v934, %v1042
        %v1106 = vmul.f32 %v935, %v1046
        %v1107 = vmul.f32 %v936, %v1050
        %v1108 = vmul.f32 %v937, %v1054
        %v1109 = vmul.f32 %v938, %v1058
        %v1110 = vmul.f32 %v939, %v1062
        %v1111 = vmul.f32 %v940, %v970
        %v1112 = vmul.f32 %v941, %v974
        %v1113 = vmul.f32 %v942, %v978
        %v1114 = vmul.f32 %v943, %v982
        %v1115 = vmul.f32 %v944, %v986
        %v1116 = vmul.f32 %v945, %v990
        %v1117 = vmul.f32 %v946, %v994
        %v1118 = vmul.f32 %v947, %v998
        %v1119 = vmul.f32 %v948, %v1002
        %v1120 = vmul.f32 %v949, %v1006
        %v1121 = vmul.f32 %v950, %v1010
        %v1122 = vmul.f32 %v951, %v1014
        %v1123 = vmul.f32 %v952, %v1018
        %v1124 = vmul.f32 %v953, %v1022
        %v1125 = vmul.f32 %v954, %v1026
        %v1126 = vmul.f32 %v955, %v1030
        %v1127 = vmul.f32 %v956, %v1034
        %v1128 = vmul.f32 %v957, %v1038
        %v1129 = vmul.f32 %v958, %v1042
        %v1130 = vmul.f32 %v959, %v1046
        %v1131 = vmul.f32 %v960, %v1050
        %v1132 = vmul.f32 %v961, %v1054
        %v1133 = vmul.f32 %v962, %v1058
        %v1134 = vmul.f32 %v963, %v1062
        %1135 = vrot.lane.b32.xlu0 %v1087, 127
        %v1136 = vpop.permute.xlu0 %1135
        %1137 = vrot.lane.b32.xlu0 %v1111, 127
        %v1138 = vpop.permute.xlu0 %1137
        %1139 = vrot.lane.b32.xlu0 %v1088, 127
        %v1140 = vpop.permute.xlu0 %1139
        %1141 = vrot.lane.b32.xlu0 %v1112, 127
        %v1142 = vpop.permute.xlu0 %1141
        %1143 = vrot.lane.b32.xlu0 %v1089, 127
        %v1144 = vpop.permute.xlu0 %1143
        %1145 = vrot.lane.b32.xlu0 %v1113, 127
        %v1146 = vpop.permute.xlu0 %1145
        %1147 = vrot.lane.b32.xlu0 %v1090, 127
        %v1148 = vpop.permute.xlu0 %1147
        %1149 = vrot.lane.b32.xlu0 %v1114, 127
        %v1150 = vpop.permute.xlu0 %1149
        %1151 = vrot.lane.b32.xlu0 %v1091, 127
        %v1152 = vpop.permute.xlu0 %1151
        %1153 = vrot.lane.b32.xlu0 %v1115, 127
        %v1154 = vpop.permute.xlu0 %1153
        %1155 = vrot.lane.b32.xlu0 %v1092, 127
        %v1156 = vpop.permute.xlu0 %1155
        %1157 = vrot.lane.b32.xlu0 %v1116, 127
        %v1158 = vpop.permute.xlu0 %1157
        %1159 = vrot.lane.b32.xlu0 %v1093, 127
        %v1160 = vpop.permute.xlu0 %1159
        %1161 = vrot.lane.b32.xlu0 %v1117, 127
        %v1162 = vpop.permute.xlu0 %1161
        %1163 = vrot.lane.b32.xlu0 %v1094, 127
        %v1164 = vpop.permute.xlu0 %1163
        %1165 = vrot.lane.b32.xlu0 %v1118, 127
        %v1166 = vpop.permute.xlu0 %1165
        %1167 = vrot.lane.b32.xlu0 %v1095, 127
        %v1168 = vpop.permute.xlu0 %1167
        %1169 = vrot.lane.b32.xlu0 %v1119, 127
        %v1170 = vpop.permute.xlu0 %1169
        %1171 = vrot.lane.b32.xlu0 %v1096, 127
        %v1172 = vpop.permute.xlu0 %1171
        %1173 = vrot.lane.b32.xlu0 %v1120, 127
        %v1174 = vpop.permute.xlu0 %1173
        %1175 = vrot.lane.b32.xlu0 %v1097, 127
        %v1176 = vpop.permute.xlu0 %1175
        %1177 = vrot.lane.b32.xlu0 %v1121, 127
        %v1178 = vpop.permute.xlu0 %1177
        %1179 = vrot.lane.b32.xlu0 %v1098, 127
        %v1180 = vpop.permute.xlu0 %1179
        %1181 = vrot.lane.b32.xlu0 %v1122, 127
        %v1182 = vpop.permute.xlu0 %1181
        %1183 = vrot.lane.b32.xlu0 %v1099, 127
        %v1184 = vpop.permute.xlu0 %1183
        %1185 = vrot.lane.b32.xlu0 %v1123, 127
        %v1186 = vpop.permute.xlu0 %1185
        %1187 = vrot.lane.b32.xlu0 %v1100, 127
        %v1188 = vpop.permute.xlu0 %1187
        %1189 = vrot.lane.b32.xlu0 %v1124, 127
        %v1190 = vpop.permute.xlu0 %1189
        %1191 = vrot.lane.b32.xlu0 %v1101, 127
        %v1192 = vpop.permute.xlu0 %1191
        %1193 = vrot.lane.b32.xlu0 %v1125, 127
        %v1194 = vpop.permute.xlu0 %1193
        %1195 = vrot.lane.b32.xlu0 %v1102, 127
        %v1196 = vpop.permute.xlu0 %1195
        %1197 = vrot.lane.b32.xlu0 %v1126, 127
        %v1198 = vpop.permute.xlu0 %1197
        %1199 = vrot.lane.b32.xlu0 %v1103, 127
        %v1200 = vpop.permute.xlu0 %1199
        %1201 = vrot.lane.b32.xlu0 %v1127, 127
        %v1202 = vpop.permute.xlu0 %1201
        %1203 = vrot.lane.b32.xlu0 %v1104, 127
        %v1204 = vpop.permute.xlu0 %1203
        %1205 = vrot.lane.b32.xlu0 %v1128, 127
        %v1206 = vpop.permute.xlu0 %1205
        %1207 = vrot.lane.b32.xlu0 %v1105, 127
        %v1208 = vpop.permute.xlu0 %1207
        %1209 = vrot.lane.b32.xlu0 %v1129, 127
        %v1210 = vpop.permute.xlu0 %1209
        %1211 = vrot.lane.b32.xlu0 %v1106, 127
        %v1212 = vpop.permute.xlu0 %1211
        %1213 = vrot.lane.b32.xlu0 %v1130, 127
        %v1214 = vpop.permute.xlu0 %1213
        %1215 = vrot.lane.b32.xlu0 %v1107, 127
        %v1216 = vpop.permute.xlu0 %1215
        %1217 = vrot.lane.b32.xlu0 %v1131, 127
        %v1218 = vpop.permute.xlu0 %1217
        %1219 = vrot.lane.b32.xlu0 %v1108, 127
        %v1220 = vpop.permute.xlu0 %1219
        %1221 = vrot.lane.b32.xlu0 %v1132, 127
        %v1222 = vpop.permute.xlu0 %1221
        %1223 = vrot.lane.b32.xlu0 %v1109, 127
        %v1224 = vpop.permute.xlu0 %1223
        %1225 = vrot.lane.b32.xlu0 %v1133, 127
        %v1226 = vpop.permute.xlu0 %1225
        %1227 = vrot.lane.b32.xlu0 %v1110, 127
        %v1228 = vpop.permute.xlu0 %1227
        %1229 = vrot.lane.b32.xlu0 %v1134, 127
        %v1230 = vpop.permute.xlu0 %1229
        %vm1231 = vcmp.lt.s32.totalorder %v625, 127
        %v1232 = vsel %vm1231, %v1224, %v1228
        %v1233 = vsel %vm1231, %v1226, %v1230
        %v1234 = vsel %vm1231, %v1220, %v1224
        %v1235 = vsel %vm1231, %v1222, %v1226
        %v1236 = vsel %vm1231, %v1216, %v1220
        %v1237 = vsel %vm1231, %v1218, %v1222
        %v1238 = vsel %vm1231, %v1212, %v1216
        %v1239 = vsel %vm1231, %v1214, %v1218
        %v1240 = vsel %vm1231, %v1208, %v1212
        %v1241 = vsel %vm1231, %v1210, %v1214
        %v1242 = vsel %vm1231, %v1204, %v1208
        %v1243 = vsel %vm1231, %v1206, %v1210
        %v1244 = vsel %vm1231, %v1200, %v1204
        %v1245 = vsel %vm1231, %v1202, %v1206
        %v1246 = vsel %vm1231, %v1196, %v1200
        %v1247 = vsel %vm1231, %v1198, %v1202
        %v1248 = vsel %vm1231, %v1192, %v1196
        %v1249 = vsel %vm1231, %v1194, %v1198
        %v1250 = vsel %vm1231, %v1188, %v1192
        %v1251 = vsel %vm1231, %v1190, %v1194
        %v1252 = vsel %vm1231, %v1184, %v1188
        %v1253 = vsel %vm1231, %v1186, %v1190
        %v1254 = vsel %vm1231, %v1180, %v1184
        %v1255 = vsel %vm1231, %v1182, %v1186
        %v1256 = vsel %vm1231, %v1176, %v1180
        %v1257 = vsel %vm1231, %v1178, %v1182
        %v1258 = vsel %vm1231, %v1172, %v1176
        %v1259 = vsel %vm1231, %v1174, %v1178
        %v1260 = vsel %vm1231, %v1168, %v1172
        %v1261 = vsel %vm1231, %v1170, %v1174
        %v1262 = vsel %vm1231, %v1164, %v1168
        %v1263 = vsel %vm1231, %v1166, %v1170
        %v1264 = vsel %vm1231, %v1160, %v1164
        %v1265 = vsel %vm1231, %v1162, %v1166
        %v1266 = vsel %vm1231, %v1156, %v1160
        %v1267 = vsel %vm1231, %v1158, %v1162
        %v1268 = vsel %vm1231, %v1152, %v1156
        %v1269 = vsel %vm1231, %v1154, %v1158
        %v1270 = vsel %vm1231, %v1148, %v1152
        %v1271 = vsel %vm1231, %v1150, %v1154
        %v1272 = vsel %vm1231, %v1144, %v1148
        %v1273 = vsel %vm1231, %v1146, %v1150
        %v1274 = vsel %vm1231, %v1140, %v1144
        %v1275 = vsel %vm1231, %v1142, %v1146
        %v1276 = vsel %vm1231, %v1136, %v1140
        %v1277 = vsel %vm1231, %v1138, %v1142
        %v1278 = vsel %vm1231, %v1228, %v1136
        %v1279 = vsel %vm1231, %v1230, %v1138
        %v1280 = vadd.f32 %v1087, %v1276
        %v1281 = vadd.f32 %v1088, %v1274
        %v1282 = vadd.f32 %v1089, %v1272
        %v1283 = vadd.f32 %v1090, %v1270
        %v1284 = vadd.f32 %v1091, %v1268
        %v1285 = vadd.f32 %v1092, %v1266
        %v1286 = vadd.f32 %v1093, %v1264
        %v1287 = vadd.f32 %v1094, %v1262
        %v1288 = vadd.f32 %v1095, %v1260
        %v1289 = vadd.f32 %v1096, %v1258
        %v1290 = vadd.f32 %v1097, %v1256
        %v1291 = vadd.f32 %v1098, %v1254
        %v1292 = vadd.f32 %v1099, %v1252
        %v1293 = vadd.f32 %v1100, %v1250
        %v1294 = vadd.f32 %v1101, %v1248
        %v1295 = vadd.f32 %v1102, %v1246
        %v1296 = vadd.f32 %v1103, %v1244
        %v1297 = vadd.f32 %v1104, %v1242
        %v1298 = vadd.f32 %v1105, %v1240
        %v1299 = vadd.f32 %v1106, %v1238
        %v1300 = vadd.f32 %v1107, %v1236
        %v1301 = vadd.f32 %v1108, %v1234
        %v1302 = vadd.f32 %v1109, %v1232
        %v1303 = vadd.f32 %v1110, %v1278
        %v1304 = vadd.f32 %v1111, %v1277
        %v1305 = vadd.f32 %v1112, %v1275
        %v1306 = vadd.f32 %v1113, %v1273
        %v1307 = vadd.f32 %v1114, %v1271
        %v1308 = vadd.f32 %v1115, %v1269
        %v1309 = vadd.f32 %v1116, %v1267
        %v1310 = vadd.f32 %v1117, %v1265
        %v1311 = vadd.f32 %v1118, %v1263
        %v1312 = vadd.f32 %v1119, %v1261
        %v1313 = vadd.f32 %v1120, %v1259
        %v1314 = vadd.f32 %v1121, %v1257
        %v1315 = vadd.f32 %v1122, %v1255
        %v1316 = vadd.f32 %v1123, %v1253
        %v1317 = vadd.f32 %v1124, %v1251
        %v1318 = vadd.f32 %v1125, %v1249
        %v1319 = vadd.f32 %v1126, %v1247
        %v1320 = vadd.f32 %v1127, %v1245
        %v1321 = vadd.f32 %v1128, %v1243
        %v1322 = vadd.f32 %v1129, %v1241
        %v1323 = vadd.f32 %v1130, %v1239
        %v1324 = vadd.f32 %v1131, %v1237
        %v1325 = vadd.f32 %v1132, %v1235
        %v1326 = vadd.f32 %v1133, %v1233
        %v1327 = vadd.f32 %v1134, %v1279
        %1328 = vrot.lane.b32.xlu0 %v1087, 126
        %v1329 = vpop.permute.xlu0 %1328
        %1330 = vrot.lane.b32.xlu0 %v1111, 126
        %v1331 = vpop.permute.xlu0 %1330
        %1332 = vrot.lane.b32.xlu0 %v1088, 126
        %v1333 = vpop.permute.xlu0 %1332
        %1334 = vrot.lane.b32.xlu0 %v1112, 126
        %v1335 = vpop.permute.xlu0 %1334
        %1336 = vrot.lane.b32.xlu0 %v1089, 126
        %v1337 = vpop.permute.xlu0 %1336
        %1338 = vrot.lane.b32.xlu0 %v1113, 126
        %v1339 = vpop.permute.xlu0 %1338
        %1340 = vrot.lane.b32.xlu0 %v1090, 126
        %v1341 = vpop.permute.xlu0 %1340
        %1342 = vrot.lane.b32.xlu0 %v1114, 126
        %v1343 = vpop.permute.xlu0 %1342
        %1344 = vrot.lane.b32.xlu0 %v1091, 126
        %v1345 = vpop.permute.xlu0 %1344
        %1346 = vrot.lane.b32.xlu0 %v1115, 126
        %v1347 = vpop.permute.xlu0 %1346
        %1348 = vrot.lane.b32.xlu0 %v1092, 126
        %v1349 = vpop.permute.xlu0 %1348
        %1350 = vrot.lane.b32.xlu0 %v1116, 126
        %v1351 = vpop.permute.xlu0 %1350
        %1352 = vrot.lane.b32.xlu0 %v1093, 126
        %v1353 = vpop.permute.xlu0 %1352
        %1354 = vrot.lane.b32.xlu0 %v1117, 126
        %v1355 = vpop.permute.xlu0 %1354
        %1356 = vrot.lane.b32.xlu0 %v1094, 126
        %v1357 = vpop.permute.xlu0 %1356
        %1358 = vrot.lane.b32.xlu0 %v1118, 126
        %v1359 = vpop.permute.xlu0 %1358
        %1360 = vrot.lane.b32.xlu0 %v1095, 126
        %v1361 = vpop.permute.xlu0 %1360
        %1362 = vrot.lane.b32.xlu0 %v1119, 126
        %v1363 = vpop.permute.xlu0 %1362
        %1364 = vrot.lane.b32.xlu0 %v1096, 126
        %v1365 = vpop.permute.xlu0 %1364
        %1366 = vrot.lane.b32.xlu0 %v1120, 126
        %v1367 = vpop.permute.xlu0 %1366
        %1368 = vrot.lane.b32.xlu0 %v1097, 126
        %v1369 = vpop.permute.xlu0 %1368
        %1370 = vrot.lane.b32.xlu0 %v1121, 126
        %v1371 = vpop.permute.xlu0 %1370
        %1372 = vrot.lane.b32.xlu0 %v1098, 126
        %v1373 = vpop.permute.xlu0 %1372
        %1374 = vrot.lane.b32.xlu0 %v1122, 126
        %v1375 = vpop.permute.xlu0 %1374
        %1376 = vrot.lane.b32.xlu0 %v1099, 126
        %v1377 = vpop.permute.xlu0 %1376
        %1378 = vrot.lane.b32.xlu0 %v1123, 126
        %v1379 = vpop.permute.xlu0 %1378
        %1380 = vrot.lane.b32.xlu0 %v1100, 126
        %v1381 = vpop.permute.xlu0 %1380
        %1382 = vrot.lane.b32.xlu0 %v1124, 126
        %v1383 = vpop.permute.xlu0 %1382
        %1384 = vrot.lane.b32.xlu0 %v1101, 126
        %v1385 = vpop.permute.xlu0 %1384
        %1386 = vrot.lane.b32.xlu0 %v1125, 126
        %v1387 = vpop.permute.xlu0 %1386
        %1388 = vrot.lane.b32.xlu0 %v1102, 126
        %v1389 = vpop.permute.xlu0 %1388
        %1390 = vrot.lane.b32.xlu0 %v1126, 126
        %v1391 = vpop.permute.xlu0 %1390
        %1392 = vrot.lane.b32.xlu0 %v1103, 126
        %v1393 = vpop.permute.xlu0 %1392
        %1394 = vrot.lane.b32.xlu0 %v1127, 126
        %v1395 = vpop.permute.xlu0 %1394
        %1396 = vrot.lane.b32.xlu0 %v1104, 126
        %v1397 = vpop.permute.xlu0 %1396
        %1398 = vrot.lane.b32.xlu0 %v1128, 126
        %v1399 = vpop.permute.xlu0 %1398
        %1400 = vrot.lane.b32.xlu0 %v1105, 126
        %v1401 = vpop.permute.xlu0 %1400
        %1402 = vrot.lane.b32.xlu0 %v1129, 126
        %v1403 = vpop.permute.xlu0 %1402
        %1404 = vrot.lane.b32.xlu0 %v1106, 126
        %v1405 = vpop.permute.xlu0 %1404
        %1406 = vrot.lane.b32.xlu0 %v1130, 126
        %v1407 = vpop.permute.xlu0 %1406
        %1408 = vrot.lane.b32.xlu0 %v1107, 126
        %v1409 = vpop.permute.xlu0 %1408
        %1410 = vrot.lane.b32.xlu0 %v1131, 126
        %v1411 = vpop.permute.xlu0 %1410
        %1412 = vrot.lane.b32.xlu0 %v1108, 126
        %v1413 = vpop.permute.xlu0 %1412
        %1414 = vrot.lane.b32.xlu0 %v1132, 126
        %v1415 = vpop.permute.xlu0 %1414
        %1416 = vrot.lane.b32.xlu0 %v1109, 126
        %v1417 = vpop.permute.xlu0 %1416
        %1418 = vrot.lane.b32.xlu0 %v1133, 126
        %v1419 = vpop.permute.xlu0 %1418
        %1420 = vrot.lane.b32.xlu0 %v1110, 126
        %v1421 = vpop.permute.xlu0 %1420
        %1422 = vrot.lane.b32.xlu0 %v1134, 126
        %v1423 = vpop.permute.xlu0 %1422
        %vm1424 = vcmp.lt.s32.totalorder %v625, 126
        %v1425 = vsel %vm1424, %v1417, %v1421
        %v1426 = vsel %vm1424, %v1419, %v1423
        %v1427 = vsel %vm1424, %v1413, %v1417
        %v1428 = vsel %vm1424, %v1415, %v1419
        %v1429 = vsel %vm1424, %v1409, %v1413
        %v1430 = vsel %vm1424, %v1411, %v1415
        %v1431 = vsel %vm1424, %v1405, %v1409
        %v1432 = vsel %vm1424, %v1407, %v1411
        %v1433 = vsel %vm1424, %v1401, %v1405
        %v1434 = vsel %vm1424, %v1403, %v1407
        %v1435 = vsel %vm1424, %v1397, %v1401
        %v1436 = vsel %vm1424, %v1399, %v1403
        %v1437 = vsel %vm1424, %v1393, %v1397
        %v1438 = vsel %vm1424, %v1395, %v1399
        %v1439 = vsel %vm1424, %v1389, %v1393
        %v1440 = vsel %vm1424, %v1391, %v1395
        %v1441 = vsel %vm1424, %v1385, %v1389
        %v1442 = vsel %vm1424, %v1387, %v1391
        %v1443 = vsel %vm1424, %v1381, %v1385
        %v1444 = vsel %vm1424, %v1383, %v1387
        %v1445 = vsel %vm1424, %v1377, %v1381
        %v1446 = vsel %vm1424, %v1379, %v1383
        %v1447 = vsel %vm1424, %v1373, %v1377
        %v1448 = vsel %vm1424, %v1375, %v1379
        %v1449 = vsel %vm1424, %v1369, %v1373
        %v1450 = vsel %vm1424, %v1371, %v1375
        %v1451 = vsel %vm1424, %v1365, %v1369
        %v1452 = vsel %vm1424, %v1367, %v1371
        %v1453 = vsel %vm1424, %v1361, %v1365
        %v1454 = vsel %vm1424, %v1363, %v1367
        %v1455 = vsel %vm1424, %v1357, %v1361
        %v1456 = vsel %vm1424, %v1359, %v1363
        %v1457 = vsel %vm1424, %v1353, %v1357
        %v1458 = vsel %vm1424, %v1355, %v1359
        %v1459 = vsel %vm1424, %v1349, %v1353
        %v1460 = vsel %vm1424, %v1351, %v1355
        %v1461 = vsel %vm1424, %v1345, %v1349
        %v1462 = vsel %vm1424, %v1347, %v1351
        %v1463 = vsel %vm1424, %v1341, %v1345
        %v1464 = vsel %vm1424, %v1343, %v1347
        %v1465 = vsel %vm1424, %v1337, %v1341
        %v1466 = vsel %vm1424, %v1339, %v1343
        %v1467 = vsel %vm1424, %v1333, %v1337
        %v1468 = vsel %vm1424, %v1335, %v1339
        %v1469 = vsel %vm1424, %v1329, %v1333
        %v1470 = vsel %vm1424, %v1331, %v1335
        %v1471 = vsel %vm1424, %v1421, %v1329
        %v1472 = vsel %vm1424, %v1423, %v1331
        %v1473 = vadd.f32 %v1280, %v1469
        %v1474 = vadd.f32 %v1281, %v1467
        %v1475 = vadd.f32 %v1282, %v1465
        %v1476 = vadd.f32 %v1283, %v1463
        %v1477 = vadd.f32 %v1284, %v1461
        %v1478 = vadd.f32 %v1285, %v1459
        %v1479 = vadd.f32 %v1286, %v1457
        %v1480 = vadd.f32 %v1287, %v1455
        %v1481 = vadd.f32 %v1288, %v1453
        %v1482 = vadd.f32 %v1289, %v1451
        %v1483 = vadd.f32 %v1290, %v1449
        %v1484 = vadd.f32 %v1291, %v1447
        %v1485 = vadd.f32 %v1292, %v1445
        %v1486 = vadd.f32 %v1293, %v1443
        %v1487 = vadd.f32 %v1294, %v1441
        %v1488 = vadd.f32 %v1295, %v1439
        %v1489 = vadd.f32 %v1296, %v1437
        %v1490 = vadd.f32 %v1297, %v1435
        %v1491 = vadd.f32 %v1298, %v1433
        %v1492 = vadd.f32 %v1299, %v1431
        %v1493 = vadd.f32 %v1300, %v1429
        %v1494 = vadd.f32 %v1301, %v1427
        %v1495 = vadd.f32 %v1302, %v1425
        %v1496 = vadd.f32 %v1303, %v1471
        %v1497 = vadd.f32 %v1304, %v1470
        %v1498 = vadd.f32 %v1305, %v1468
        %v1499 = vadd.f32 %v1306, %v1466
        %v1500 = vadd.f32 %v1307, %v1464
        %v1501 = vadd.f32 %v1308, %v1462
        %v1502 = vadd.f32 %v1309, %v1460
        %v1503 = vadd.f32 %v1310, %v1458
        %v1504 = vadd.f32 %v1311, %v1456
        %v1505 = vadd.f32 %v1312, %v1454
        %v1506 = vadd.f32 %v1313, %v1452
        %v1507 = vadd.f32 %v1314, %v1450
        %v1508 = vadd.f32 %v1315, %v1448
        %v1509 = vadd.f32 %v1316, %v1446
        %v1510 = vadd.f32 %v1317, %v1444
        %v1511 = vadd.f32 %v1318, %v1442
        %v1512 = vadd.f32 %v1319, %v1440
        %v1513 = vadd.f32 %v1320, %v1438
        %v1514 = vadd.f32 %v1321, %v1436
        %v1515 = vadd.f32 %v1322, %v1434
        %v1516 = vadd.f32 %v1323, %v1432
        %v1517 = vadd.f32 %v1324, %v1430
        %v1518 = vadd.f32 %v1325, %v1428
        %v1519 = vadd.f32 %v1326, %v1426
        %v1520 = vadd.f32 %v1327, %v1472
        %v1524 = vlaneseq
        %v1525 = vshrl.u32 %v1524, 7
        %v1526 = vsub.s32 0, %v1525
        %v1527 = vrot.slane %v250, %v1526
        %v1528 = vlaneseq
        %v1529 = vshrl.u32 %v1528, 7
        %v1530 = vsub.s32 1, %v1529
        %v1531 = vrot.slane %v250, %v1530
        %v1532 = vlaneseq
        %v1533 = vshrl.u32 %v1532, 7
        %v1534 = vsub.s32 2, %v1533
        %v1535 = vrot.slane %v250, %v1534
        %v1536 = vlaneseq
        %v1537 = vshrl.u32 %v1536, 7
        %v1538 = vsub.s32 3, %v1537
        %v1539 = vrot.slane %v250, %v1538
        %v1540 = vlaneseq
        %v1541 = vshrl.u32 %v1540, 7
        %v1542 = vsub.s32 4, %v1541
        %v1543 = vrot.slane %v250, %v1542
        %v1544 = vlaneseq
        %v1545 = vshrl.u32 %v1544, 7
        %v1546 = vsub.s32 5, %v1545
        %v1547 = vrot.slane %v250, %v1546
        %v1548 = vlaneseq
        %v1549 = vshrl.u32 %v1548, 7
        %v1550 = vsub.s32 6, %v1549
        %v1551 = vrot.slane %v250, %v1550
        %v1552 = vlaneseq
        %v1553 = vshrl.u32 %v1552, 7
        %v1554 = vsub.s32 7, %v1553
        %v1555 = vrot.slane %v250, %v1554
        %v1556 = vlaneseq
        %v1557 = vshrl.u32 %v1556, 7
        %v1558 = vsub.s32 0, %v1557
        %v1559 = vrot.slane %v252, %v1558
        %v1560 = vlaneseq
        %v1561 = vshrl.u32 %v1560, 7
        %v1562 = vsub.s32 1, %v1561
        %v1563 = vrot.slane %v252, %v1562
        %v1564 = vlaneseq
        %v1565 = vshrl.u32 %v1564, 7
        %v1566 = vsub.s32 2, %v1565
        %v1567 = vrot.slane %v252, %v1566
        %v1568 = vlaneseq
        %v1569 = vshrl.u32 %v1568, 7
        %v1570 = vsub.s32 3, %v1569
        %v1571 = vrot.slane %v252, %v1570
        %v1572 = vlaneseq
        %v1573 = vshrl.u32 %v1572, 7
        %v1574 = vsub.s32 4, %v1573
        %v1575 = vrot.slane %v252, %v1574
        %v1576 = vlaneseq
        %v1577 = vshrl.u32 %v1576, 7
        %v1578 = vsub.s32 5, %v1577
        %v1579 = vrot.slane %v252, %v1578
        %v1580 = vlaneseq
        %v1581 = vshrl.u32 %v1580, 7
        %v1582 = vsub.s32 6, %v1581
        %v1583 = vrot.slane %v252, %v1582
        %v1584 = vlaneseq
        %v1585 = vshrl.u32 %v1584, 7
        %v1586 = vsub.s32 7, %v1585
        %v1587 = vrot.slane %v252, %v1586
        %v1588 = vlaneseq
        %v1589 = vshrl.u32 %v1588, 7
        %v1590 = vsub.s32 0, %v1589
        %v1591 = vrot.slane %v254, %v1590
        %v1592 = vlaneseq
        %v1593 = vshrl.u32 %v1592, 7
        %v1594 = vsub.s32 1, %v1593
        %v1595 = vrot.slane %v254, %v1594
        %v1596 = vlaneseq
        %v1597 = vshrl.u32 %v1596, 7
        %v1598 = vsub.s32 2, %v1597
        %v1599 = vrot.slane %v254, %v1598
        %v1600 = vlaneseq
        %v1601 = vshrl.u32 %v1600, 7
        %v1602 = vsub.s32 3, %v1601
        %v1603 = vrot.slane %v254, %v1602
        %v1604 = vlaneseq
        %v1605 = vshrl.u32 %v1604, 7
        %v1606 = vsub.s32 4, %v1605
        %v1607 = vrot.slane %v254, %v1606
        %v1608 = vlaneseq
        %v1609 = vshrl.u32 %v1608, 7
        %v1610 = vsub.s32 5, %v1609
        %v1611 = vrot.slane %v254, %v1610
        %v1612 = vlaneseq
        %v1613 = vshrl.u32 %v1612, 7
        %v1614 = vsub.s32 6, %v1613
        %v1615 = vrot.slane %v254, %v1614
        %v1616 = vlaneseq
        %v1617 = vshrl.u32 %v1616, 7
        %v1618 = vsub.s32 7, %v1617
        %v1619 = vrot.slane %v254, %v1618
        %v1644 = vmul.f32 %v1527, %v1473
        %v1645 = vmul.f32 %v1531, %v1474
        %v1646 = vmul.f32 %v1535, %v1475
        %v1647 = vmul.f32 %v1539, %v1476
        %v1648 = vmul.f32 %v1543, %v1477
        %v1649 = vmul.f32 %v1547, %v1478
        %v1650 = vmul.f32 %v1551, %v1479
        %v1651 = vmul.f32 %v1555, %v1480
        %v1652 = vmul.f32 %v1559, %v1481
        %v1653 = vmul.f32 %v1563, %v1482
        %v1654 = vmul.f32 %v1567, %v1483
        %v1655 = vmul.f32 %v1571, %v1484
        %v1656 = vmul.f32 %v1575, %v1485
        %v1657 = vmul.f32 %v1579, %v1486
        %v1658 = vmul.f32 %v1583, %v1487
        %v1659 = vmul.f32 %v1587, %v1488
        %v1660 = vmul.f32 %v1591, %v1489
        %v1661 = vmul.f32 %v1595, %v1490
        %v1662 = vmul.f32 %v1599, %v1491
        %v1663 = vmul.f32 %v1603, %v1492
        %v1664 = vmul.f32 %v1607, %v1493
        %v1665 = vmul.f32 %v1611, %v1494
        %v1666 = vmul.f32 %v1615, %v1495
        %v1667 = vmul.f32 %v1619, %v1496
        %v1668 = vmul.f32 %v1527, %v1497
        %v1669 = vmul.f32 %v1531, %v1498
        %v1670 = vmul.f32 %v1535, %v1499
        %v1671 = vmul.f32 %v1539, %v1500
        %v1672 = vmul.f32 %v1543, %v1501
        %v1673 = vmul.f32 %v1547, %v1502
        %v1674 = vmul.f32 %v1551, %v1503
        %v1675 = vmul.f32 %v1555, %v1504
        %v1676 = vmul.f32 %v1559, %v1505
        %v1677 = vmul.f32 %v1563, %v1506
        %v1678 = vmul.f32 %v1567, %v1507
        %v1679 = vmul.f32 %v1571, %v1508
        %v1680 = vmul.f32 %v1575, %v1509
        %v1681 = vmul.f32 %v1579, %v1510
        %v1682 = vmul.f32 %v1583, %v1511
        %v1683 = vmul.f32 %v1587, %v1512
        %v1684 = vmul.f32 %v1591, %v1513
        %v1685 = vmul.f32 %v1595, %v1514
        %v1686 = vmul.f32 %v1599, %v1515
        %v1687 = vmul.f32 %v1603, %v1516
        %v1688 = vmul.f32 %v1607, %v1517
        %v1689 = vmul.f32 %v1611, %v1518
        %v1690 = vmul.f32 %v1615, %v1519
        %v1691 = vmul.f32 %v1619, %v1520
        %v1692 = vadd.f32 %v309, %v1644
        %v1693 = vadd.f32 %v310, %v1645
        %v1694 = vadd.f32 %v311, %v1646
        %v1695 = vadd.f32 %v312, %v1647
        %v1696 = vadd.f32 %v313, %v1648
        %v1697 = vadd.f32 %v314, %v1649
        %v1698 = vadd.f32 %v315, %v1650
        %v1699 = vadd.f32 %v316, %v1651
        %v1700 = vadd.f32 %v317, %v1652
        %v1701 = vadd.f32 %v318, %v1653
        %v1702 = vadd.f32 %v319, %v1654
        %v1703 = vadd.f32 %v320, %v1655
        %v1704 = vadd.f32 %v321, %v1656
        %v1705 = vadd.f32 %v322, %v1657
        %v1706 = vadd.f32 %v323, %v1658
        %v1707 = vadd.f32 %v324, %v1659
        %v1708 = vadd.f32 %v325, %v1660
        %v1709 = vadd.f32 %v326, %v1661
        %v1710 = vadd.f32 %v327, %v1662
        %v1711 = vadd.f32 %v328, %v1663
        %v1712 = vadd.f32 %v329, %v1664
        %v1713 = vadd.f32 %v330, %v1665
        %v1714 = vadd.f32 %v331, %v1666
        %v1715 = vadd.f32 %v332, %v1667
        %v1716 = vadd.f32 %v333, %v1668
        %v1717 = vadd.f32 %v334, %v1669
        %v1718 = vadd.f32 %v335, %v1670
        %v1719 = vadd.f32 %v336, %v1671
        %v1720 = vadd.f32 %v337, %v1672
        %v1721 = vadd.f32 %v338, %v1673
        %v1722 = vadd.f32 %v339, %v1674
        %v1723 = vadd.f32 %v340, %v1675
        %v1724 = vadd.f32 %v341, %v1676
        %v1725 = vadd.f32 %v342, %v1677
        %v1726 = vadd.f32 %v343, %v1678
        %v1727 = vadd.f32 %v344, %v1679
        %v1728 = vadd.f32 %v345, %v1680
        %v1729 = vadd.f32 %v346, %v1681
        %v1730 = vadd.f32 %v347, %v1682
        %v1731 = vadd.f32 %v348, %v1683
        %v1732 = vadd.f32 %v349, %v1684
        %v1733 = vadd.f32 %v350, %v1685
        %v1734 = vadd.f32 %v351, %v1686
        %v1735 = vadd.f32 %v352, %v1687
        %v1736 = vadd.f32 %v353, %v1688
        %v1737 = vadd.f32 %v354, %v1689
        %v1738 = vadd.f32 %v355, %v1690
        %v1739 = vadd.f32 %v356, %v1691
        %1740 = vst [vmem:[%s240] sm:$0xff] %v1692
        %1741 = vst [vmem:[%s240 + $0x8] sm:$0xff] %v1693
        %1742 = vst [vmem:[%s240 + $0x10] sm:$0xff] %v1694
        %1743 = vst [vmem:[%s240 + $0x18] sm:$0xff] %v1695
        %1744 = vst [vmem:[%s240 + $0x20] sm:$0xff] %v1696
        %1745 = vst [vmem:[%s240 + $0x28] sm:$0xff] %v1697
        %1746 = vst [vmem:[%s240 + $0x30] sm:$0xff] %v1698
        %1747 = vst [vmem:[%s240 + $0x38] sm:$0xff] %v1699
        %1748 = vst [vmem:[%s240 + $0x40] sm:$0xff] %v1700
        %1749 = vst [vmem:[%s240 + $0x48] sm:$0xff] %v1701
        %1750 = vst [vmem:[%s240 + $0x50] sm:$0xff] %v1702
        %1751 = vst [vmem:[%s240 + $0x58] sm:$0xff] %v1703
        %1752 = vst [vmem:[%s240 + $0x60] sm:$0xff] %v1704
        %1753 = vst [vmem:[%s240 + $0x68] sm:$0xff] %v1705
        %1754 = vst [vmem:[%s240 + $0x70] sm:$0xff] %v1706
        %1755 = vst [vmem:[%s240 + $0x78] sm:$0xff] %v1707
        %1756 = vst [vmem:[%s240 + $0x80] sm:$0xff] %v1708
        %1757 = vst [vmem:[%s240 + $0x88] sm:$0xff] %v1709
        %1758 = vst [vmem:[%s240 + $0x90] sm:$0xff] %v1710
        %1759 = vst [vmem:[%s240 + $0x98] sm:$0xff] %v1711
        %1760 = vst [vmem:[%s240 + $0xa0] sm:$0xff] %v1712
        %1761 = vst [vmem:[%s240 + $0xa8] sm:$0xff] %v1713
        %1762 = vst [vmem:[%s240 + $0xb0] sm:$0xff] %v1714
        %1763 = vst [vmem:[%s240 + $0xb8] sm:$0xff] %v1715
        %1764 = vst [vmem:[%s240 + $0xc0] sm:$0xff] %v1716
        %1765 = vst [vmem:[%s240 + $0xc8] sm:$0xff] %v1717
        %1766 = vst [vmem:[%s240 + $0xd0] sm:$0xff] %v1718
        %1767 = vst [vmem:[%s240 + $0xd8] sm:$0xff] %v1719
        %1768 = vst [vmem:[%s240 + $0xe0] sm:$0xff] %v1720
        %1769 = vst [vmem:[%s240 + $0xe8] sm:$0xff] %v1721
        %1770 = vst [vmem:[%s240 + $0xf0] sm:$0xff] %v1722
        %1771 = vst [vmem:[%s240 + $0xf8] sm:$0xff] %v1723
        %1772 = vst [vmem:[%s240 + $0x100] sm:$0xff] %v1724
        %1773 = vst [vmem:[%s240 + $0x108] sm:$0xff] %v1725
        %1774 = vst [vmem:[%s240 + $0x110] sm:$0xff] %v1726
        %1775 = vst [vmem:[%s240 + $0x118] sm:$0xff] %v1727
        %1776 = vst [vmem:[%s240 + $0x120] sm:$0xff] %v1728
        %1777 = vst [vmem:[%s240 + $0x128] sm:$0xff] %v1729
        %1778 = vst [vmem:[%s240 + $0x130] sm:$0xff] %v1730
        %1779 = vst [vmem:[%s240 + $0x138] sm:$0xff] %v1731
        %1780 = vst [vmem:[%s240 + $0x140] sm:$0xff] %v1732
        %1781 = vst [vmem:[%s240 + $0x148] sm:$0xff] %v1733
        %1782 = vst [vmem:[%s240 + $0x150] sm:$0xff] %v1734
        %1783 = vst [vmem:[%s240 + $0x158] sm:$0xff] %v1735
        %1784 = vst [vmem:[%s240 + $0x160] sm:$0xff] %v1736
        %1785 = vst [vmem:[%s240 + $0x168] sm:$0xff] %v1737
        %1786 = vst [vmem:[%s240 + $0x170] sm:$0xff] %v1738
        %1787 = vst [vmem:[%s240 + $0x178] sm:$0xff] %v1739
        %s1788 = sand.u32 %s102, 1
        %s1789 = scalar_lea.sflag [#allocation4], %s1788
        %s1790 = sand.u32 %s102, 1
        %s1791 = smul.addr %s1790, 384
        %s1792 = scalar_lea.vmem [#allocation8], %s1791
        // Predicated region
        $region45: #{tpu_custom_call.1} parent=31 // pred_check
          %p1793 = pneg %p112
        $region46: #{tpu_custom_call.1} parent=31 // pred_check_branch
          %1795 = sbr.rel (%p1793) target = $region48
        $region47: #{tpu_custom_call.1} parent=31 // pred_region
          %s1796 = smul.u32 2, %s21
          %s1798 = ssub.s32 6144, 6144
          %1799 = vsyncadd %s1789, %s1798
          %s1800 = smul.addr %s1796, 24
          %s1801 = smul.addr %s1800, 128
          %s1802 = scalar_lea.hbm %s3, %s1801
          %s1803 = sshll.u32 %s1792, 4
          %s1804 = int_to_ptr.vmem [resolvable:$true] %s1803
          %1809 = dma.vmem_to_hbm [thread:$0]  %s1804, 6144, %s1802, %s1789, 3072, 3072, 192
        $region48: #{tpu_custom_call.1} parent=31 // pred_fallthru
          _
      $region32: #{tpu_custom_call.1} parent=5 // pred_fallthru
        _
      %p1810 = scmp.le.s32.totalorder 2, %s16
      // Predicated region
      $region49: #{tpu_custom_call.1} parent=5 // pred_check
        %p1811 = pneg %p1810
      $region50: #{tpu_custom_call.1} parent=5 // pred_check_branch
        %1813 = sbr.rel (%p1811) target = $region52
      $region51: #{tpu_custom_call.1} parent=5 // pred_region
        %s1814 = ssub.s32 %s16, 2
        // Predicated region
        $region53: #{tpu_custom_call.1} parent=51 // pred_check
          %p1815 = pneg %p118
        $region54: #{tpu_custom_call.1} parent=51 // pred_check_branch
          %1817 = sbr.rel (%p1815) target = $region56
        $region55: #{tpu_custom_call.1} parent=51 // pred_region
          %s1818 = sand.u32 %s103, 1
          %s1819 = scalar_lea.sflag [#allocation4], %s1818
          %s1820 = sand.u32 %s103, 1
          %s1821 = smul.addr %s1820, 384
          %s1822 = scalar_lea.vmem [#allocation8], %s1821
          %1823 = dma.done %s1819, 6144
        $region56: #{tpu_custom_call.1} parent=51 // pred_fallthru
          _
      $region52: #{tpu_custom_call.1} parent=5 // pred_fallthru
        _
    $region6: #{tpu_custom_call.1} parent=1 // loop_footer
      %s20 = sadd.s32 1, %s16
    $region7: #{tpu_custom_call.1} parent=1 // loop_footer_branch
      %15 = sbr.rel target = $region3
    $region8: #{tpu_custom_call.1} parent=1 // loop_exit
      _
    %1824 = vsyncpa [#allocation3], 1
    %s1825 = scalar_lea.sflag [#allocation3], 1
    %1826 = vsyncpa %s1825, 1
    %1827 = vsyncpa [#allocation6], 1
    %s1828 = scalar_lea.sflag [#allocation6], 1
    %1829 = vsyncpa %s1828, 1
    %1830 = vsyncpa [#allocation4], 1
    %s1831 = scalar_lea.sflag [#allocation4], 1
    %1832 = vsyncpa %s1831, 1

</llo_original>
